<compile_context>
chip_gen: v5e
topology: v5e:2x2
jax: 0.10.0
libtpu: 0.0.40
codegen_flags: <defaults>
</compile_context>

<pallas_src>
import functools

import jax
import jax.numpy as jnp
from jax.experimental import pallas as pl
from jax.experimental.pallas import tpu as pltpu


_INV_SQRT2 = 0.7071067811865476


def _gelu_exact(x):
    # PyTorch nn.GELU() default is the exact (erf-based) GELU; keep it in f32.
    return 0.5 * x * (1.0 + jax.lax.erf(x * jnp.float32(_INV_SQRT2)))


def mlp_kernel(x_ref, w1_ref, b1_ref, w2_ref, b2_ref, o_ref, acc_ref):
    """Grid = (M_tiles, H_tiles). Hidden axis (last) is the fc1->fc2 reduction."""
    h_idx = pl.program_id(1)

    @pl.when(h_idx == 0)
    def _init():
        acc_ref[...] = jnp.zeros_like(acc_ref)

    x = x_ref[...]
    # fc1 block (MXU) + bias + exact GELU, all accumulated/evaluated in f32.
    h = jnp.dot(x, w1_ref[...], preferred_element_type=jnp.float32)
    h = h + b1_ref[...].astype(jnp.float32)
    h = _gelu_exact(h)
    # dropout(p=0) is identity -> skip.
    # fc2 partial product for this hidden block, accumulated in f32 scratch.
    acc_ref[...] += jnp.dot(h.astype(w2_ref.dtype), w2_ref[...],
                            preferred_element_type=jnp.float32)

    @pl.when(h_idx == pl.num_programs(1) - 1)
    def _finalize():
        o_ref[...] = (acc_ref[...] + b2_ref[...].astype(jnp.float32)).astype(o_ref.dtype)


def _pad_axis(a, axis, multiple):
    size = a.shape[axis]
    pad = (-size) % multiple
    if pad == 0:
        return a
    widths = [(0, 0)] * a.ndim
    widths[axis] = (0, pad)
    return jnp.pad(a, widths)


def _vmem_budget_bytes(tile_m, tile_h, cin_p, cout_p, in_itemsize, out_itemsize):
    dbl = 2  # BlockSpec double-buffering
    inputs = (tile_m * cin_p            # x tile
              + cin_p * tile_h          # W1 block
              + 8 * tile_h              # b1 block (sublane-padded)
              + tile_h * cout_p         # W2 block
              + 8 * cout_p              # b2
              ) * in_itemsize * dbl
    outputs = tile_m * cout_p * out_itemsize * dbl
    acc = tile_m * cout_p * 4
    need = inputs + outputs + acc
    # 2x headroom, clamped to [32 MiB, 100 MiB].
    return int(min(max(2 * need, 32 * 1024 * 1024), 100 * 1024 * 1024))


@functools.partial(jax.jit, static_argnames=("tile_m", "tile_h", "compute_dtype"))
def mlp_forward(x, w1, b1, w2, b2, *, tile_m=256, tile_h=512, compute_dtype=None):
    """x: (B, S, C_in). Returns (B, S, C_out) in x.dtype.

    compute_dtype: optional matmul-operand dtype (e.g. jnp.bfloat16). Accumulation,
    bias add and GELU stay in f32 regardless.
    """
    orig_dtype = x.dtype
    *lead, C_in = x.shape
    hidden = w1.shape[1]
    C_out = w2.shape[1]
    M = 1
    for d in lead:
        M *= d

    # Round tile sizes to hardware-friendly multiples.
    tile_m = max(8, (tile_m // 8) * 8)
    tile_h = max(128, (tile_h // 128) * 128)

    cdt = jnp.dtype(compute_dtype) if compute_dtype is not None else jnp.dtype(orig_dtype)

    # Flatten + pad: M -> tile_m multiple, channels -> 128-lane multiples,
    # hidden -> tile_h multiple (zero padding is exact for this computation).
    x2 = _pad_axis(_pad_axis(x.reshape(M, C_in), 0, tile_m), 1, 128)
    w1p = _pad_axis(_pad_axis(w1, 0, 128), 1, tile_h)
    b1p = _pad_axis(b1.reshape(1, hidden), 1, tile_h)
    w2p = _pad_axis(_pad_axis(w2, 0, tile_h), 1, 128)
    b2p = _pad_axis(b2.reshape(1, C_out), 1, 128)

    M_pad, Cin_p = x2.shape
    H_pad = w1p.shape[1]
    Cout_p = w2p.shape[1]

    x2 = x2.astype(cdt)
    w1p = w1p.astype(cdt)
    w2p = w2p.astype(cdt)
    b1p = b1p.astype(cdt)
    b2p = b2p.astype(cdt)

    vmem_limit = _vmem_budget_bytes(tile_m, tile_h, Cin_p, Cout_p,
                                    cdt.itemsize, jnp.dtype(orig_dtype).itemsize)

    out = pl.pallas_call(
        mlp_kernel,
        out_shape=jax.ShapeDtypeStruct((M_pad, Cout_p), orig_dtype),
        grid_spec=pltpu.PrefetchScalarGridSpec(
            num_scalar_prefetch=0,
            grid=(M_pad // tile_m, H_pad // tile_h),
            in_specs=[
                pl.BlockSpec((tile_m, Cin_p), lambda i, h: (i, 0)),   # x tile
                pl.BlockSpec((Cin_p, tile_h), lambda i, h: (0, h)),   # W1 column block
                pl.BlockSpec((1, tile_h), lambda i, h: (0, h)),       # b1 block
                pl.BlockSpec((tile_h, Cout_p), lambda i, h: (h, 0)),  # W2 row block
                pl.BlockSpec((1, Cout_p), lambda i, h: (0, 0)),       # b2
            ],
            out_specs=pl.BlockSpec((tile_m, Cout_p), lambda i, h: (i, 0)),
            scratch_shapes=[pltpu.VMEM((tile_m, Cout_p), jnp.float32)],
        ),
        compiler_params=pltpu.CompilerParams(
            dimension_semantics=("parallel", "arbitrary"),
            vmem_limit_bytes=vmem_limit,
        ),
    )(x2, w1p, b1p, w2p, b2p)

    return out[:M, :C_out].reshape(*lead, C_out)


def init_params(key, in_features, hidden_features, out_features):
    # Deterministic init mimicking PyTorch nn.Linear default (uniform +-1/sqrt(fan_in)).
    k1, k2, k3, k4 = jax.random.split(key, 4)
    lim1 = 1.0 / jnp.sqrt(in_features)
    lim2 = 1.0 / jnp.sqrt(hidden_features)
    w1 = jax.random.uniform(k1, (in_features, hidden_features), jnp.float32, -lim1, lim1)
    b1 = jax.random.uniform(k2, (hidden_features,), jnp.float32, -lim1, lim1)
    w2 = jax.random.uniform(k3, (hidden_features, out_features), jnp.float32, -lim2, lim2)
    b2 = jax.random.uniform(k4, (out_features,), jnp.float32, -lim2, lim2)
    return w1, b1, w2, b2


if __name__ == "__main__":
    # Small shapes consistent with a transformer MLP forward: (B, S, C_in).
    # hidden=192 (-> padded 256) so the tile_h=128 run exercises the hidden-axis accumulator.
    B, S = 2, 8
    in_features, hidden_features, out_features = 32, 192, 32

    key = jax.random.PRNGKey(0)
    kx, kp = jax.random.split(key)
    x = jax.random.normal(kx, (B, S, in_features), jnp.float32)
    w1, b1, w2, b2 = init_params(kp, in_features, hidden_features, out_features)

    # Plain-JAX reference (exact erf GELU; dropout p=0 is identity).
    h_ref = x @ w1 + b1
    h_ref = 0.5 * h_ref * (1.0 + jax.lax.erf(h_ref / jnp.sqrt(2.0)))
    ref = h_ref @ w2 + b2

    # f32 path (exact PyTorch semantics); small tiles to exercise multi-step hidden reduction.
    out = mlp_forward(x, w1, b1, w2, b2, tile_m=128, tile_h=128)
    out = jax.block_until_ready(out)
    assert out.shape == (B, S, out_features)
    assert jnp.allclose(out, ref, atol=1e-5, rtol=1e-5)

    # bf16-operand performance path (f32 accumulation / bias / GELU); looser tolerance.
    out_bf16 = mlp_forward(x, w1, b1, w2, b2, tile_m=128, tile_h=128,
                           compute_dtype=jnp.bfloat16)
    out_bf16 = jax.block_until_ready(out_bf16)
    assert out_bf16.shape == (B, S, out_features)
    assert jnp.allclose(out_bf16, ref, atol=5e-2, rtol=5e-2)

    print("KERNEL_OK")
</pallas_src>

<mosaic_0001>
module attributes {stable_mosaic.version = 11 : i64} {
  func.func @mlp_kernel(%arg0: i32, %arg1: i32, %arg2: memref<128x128xf32, #tpu.memory_space<vmem>>, %arg3: memref<128x128xf32, #tpu.memory_space<vmem>>, %arg4: memref<1x128xf32, #tpu.memory_space<vmem>>, %arg5: memref<128x128xf32, #tpu.memory_space<vmem>>, %arg6: memref<1x128xf32, #tpu.memory_space<vmem>>, %arg7: memref<128x128xf32, #tpu.memory_space<vmem>>, %arg8: memref<128x128xf32, #tpu.memory_space<vmem>>) attributes {dimension_semantics = [#tpu.dimension_semantics<parallel>, #tpu.dimension_semantics<arbitrary>], iteration_bounds = array<i64: 1, 2>, scalar_prefetch = 0 : i64, scratch_operands = 1 : i64, tpu.core_type = #tpu.core_type<tc>, window_params = [{transform_indices = @transform_0, window_bounds = array<i64: 128, 128>}, {transform_indices = @transform_1, window_bounds = array<i64: 128, 128>}, {transform_indices = @transform_2, window_bounds = array<i64: 1, 128>}, {transform_indices = @transform_3, window_bounds = array<i64: 128, 128>}, {pipeline_mode = #tpu.pipeline_mode<synchronous>, transform_indices = @transform_4, window_bounds = array<i64: 1, 128>}, {transform_indices = @transform_5, window_bounds = array<i64: 128, 128>}]} {
    %c0_i32 = arith.constant 0 : i32
    %0 = arith.cmpi eq, %arg1, %c0_i32 : i32
    %1 = arith.extui %0 : i1 to i32
    %c0_i32_0 = arith.constant 0 : i32
    %2 = arith.cmpi ne, %1, %c0_i32_0 : i32
    scf.if %2 {
      %cst_17 = arith.constant 0.000000e+00 : f32
      %25 = vector.broadcast %cst_17 : f32 to vector<128x128xf32>
      %c0_18 = arith.constant 0 : index
      %c0_19 = arith.constant 0 : index
      %26 = vector.load %arg8[%c0_18, %c0_19] : memref<128x128xf32, #tpu.memory_space<vmem>>, vector<128x128xf32>
      tpu.vector_store %arg8[%c0_18, %c0_19], %25 {strides = array<i32>} : memref<128x128xf32, #tpu.memory_space<vmem>>, vector<128x128xf32>,
    } else {
    }
    %c0 = arith.constant 0 : index
    %c0_1 = arith.constant 0 : index
    %3 = vector.load %arg2[%c0, %c0_1] : memref<128x128xf32, #tpu.memory_space<vmem>>, vector<128x128xf32>
    %c0_2 = arith.constant 0 : index
    %c0_3 = arith.constant 0 : index
    %4 = vector.load %arg3[%c0_2, %c0_3] : memref<128x128xf32, #tpu.memory_space<vmem>>, vector<128x128xf32>
    %cst = arith.constant dense<0.000000e+00> : vector<128x128xf32>
    %5 = tpu.matmul %3, %4, %cst {dimension_numbers = #tpu.dot_dimension_numbers<[1], [0], [0], [1], [0, 0, 1, 1], [], []>} : vector<128x128xf32>, vector<128x128xf32>, vector<128x128xf32> -> vector<128x128xf32>
    %c0_4 = arith.constant 0 : index
    %c0_5 = arith.constant 0 : index
    %6 = vector.load %arg4[%c0_4, %c0_5] : memref<1x128xf32, #tpu.memory_space<vmem>>, vector<1x128xf32>
    %7 = vector.broadcast %6 : vector<1x128xf32> to vector<128x128xf32>
    %8 = arith.addf %5, %7 : vector<128x128xf32>
    %cst_6 = arith.constant 5.000000e-01 : f32
    %9 = vector.broadcast %cst_6 : f32 to vector<128x128xf32>
    %10 = arith.mulf %9, %8 : vector<128x128xf32>
    %cst_7 = arith.constant 0.707106769 : f32
    %11 = vector.broadcast %cst_7 : f32 to vector<128x128xf32>
    %12 = arith.mulf %8, %11 : vector<128x128xf32>
    %13 = math.erf %12 : vector<128x128xf32>
    %cst_8 = arith.constant 1.000000e+00 : f32
    %14 = vector.broadcast %cst_8 : f32 to vector<128x128xf32>
    %15 = arith.addf %14, %13 : vector<128x128xf32>
    %16 = arith.mulf %10, %15 : vector<128x128xf32>
    %c0_9 = arith.constant 0 : index
    %c0_10 = arith.constant 0 : index
    %17 = vector.load %arg8[%c0_9, %c0_10] : memref<128x128xf32, #tpu.memory_space<vmem>>, vector<128x128xf32>
    %c0_11 = arith.constant 0 : index
    %c0_12 = arith.constant 0 : index
    %18 = vector.load %arg5[%c0_11, %c0_12] : memref<128x128xf32, #tpu.memory_space<vmem>>, vector<128x128xf32>
    %cst_13 = arith.constant dense<0.000000e+00> : vector<128x128xf32>
    %19 = tpu.matmul %16, %18, %cst_13 {dimension_numbers = #tpu.dot_dimension_numbers<[1], [0], [0], [1], [0, 0, 1, 1], [], []>} : vector<128x128xf32>, vector<128x128xf32>, vector<128x128xf32> -> vector<128x128xf32>
    %20 = arith.addf %17, %19 : vector<128x128xf32>
    %c0_14 = arith.constant 0 : index
    %c0_15 = arith.constant 0 : index
    %21 = vector.load %arg8[%c0_14, %c0_15] : memref<128x128xf32, #tpu.memory_space<vmem>>, vector<128x128xf32>
    tpu.vector_store %arg8[%c0_14, %c0_15], %20 {strides = array<i32>} : memref<128x128xf32, #tpu.memory_space<vmem>>, vector<128x128xf32>,
    %c1_i32 = arith.constant 1 : i32
    %22 = arith.cmpi eq, %arg1, %c1_i32 : i32
    %23 = arith.extui %22 : i1 to i32
    %c0_i32_16 = arith.constant 0 : i32
    %24 = arith.cmpi ne, %23, %c0_i32_16 : i32
    scf.if %24 {
      %c0_17 = arith.constant 0 : index
      %c0_18 = arith.constant 0 : index
      %25 = vector.load %arg8[%c0_17, %c0_18] : memref<128x128xf32, #tpu.memory_space<vmem>>, vector<128x128xf32>
      %c0_19 = arith.constant 0 : index
      %c0_20 = arith.constant 0 : index
      %26 = vector.load %arg6[%c0_19, %c0_20] : memref<1x128xf32, #tpu.memory_space<vmem>>, vector<1x128xf32>
      %27 = vector.broadcast %26 : vector<1x128xf32> to vector<128x128xf32>
      %28 = arith.addf %25, %27 : vector<128x128xf32>
      %c0_21 = arith.constant 0 : index
      %c0_22 = arith.constant 0 : index
      %29 = vector.load %arg7[%c0_21, %c0_22] : memref<128x128xf32, #tpu.memory_space<vmem>>, vector<128x128xf32>
      tpu.vector_store %arg7[%c0_21, %c0_22], %28 {strides = array<i32>} : memref<128x128xf32, #tpu.memory_space<vmem>>, vector<128x128xf32>,
    } else {
    }
    return
  }
  func.func @transform_0(%arg0: i32, %arg1: i32) -> (i32, i32) {
    %c0_i32 = arith.constant 0 : i32
    %c0_i32_0 = arith.constant 0 : i32
    return %arg0, %c0_i32 : i32, i32
  }
  func.func @transform_1(%arg0: i32, %arg1: i32) -> (i32, i32) {
    %c0_i32 = arith.constant 0 : i32
    %c0_i32_0 = arith.constant 0 : i32
    return %c0_i32, %arg1 : i32, i32
  }
  func.func @transform_2(%arg0: i32, %arg1: i32) -> (i32, i32) {
    %c0_i32 = arith.constant 0 : i32
    %c0_i32_0 = arith.constant 0 : i32
    return %c0_i32, %arg1 : i32, i32
  }
  func.func @transform_3(%arg0: i32, %arg1: i32) -> (i32, i32) {
    %c0_i32 = arith.constant 0 : i32
    %c0_i32_0 = arith.constant 0 : i32
    return %arg1, %c0_i32 : i32, i32
  }
  func.func @transform_4(%arg0: i32, %arg1: i32) -> (i32, i32) {
    %c0_i32 = arith.constant 0 : i32
    %c0_i32_0 = arith.constant 0 : i32
    %c0_i32_1 = arith.constant 0 : i32
    return %c0_i32, %c0_i32_0 : i32, i32
  }
  func.func @transform_5(%arg0: i32, %arg1: i32) -> (i32, i32) {
    %c0_i32 = arith.constant 0 : i32
    %c0_i32_0 = arith.constant 0 : i32
    return %arg0, %c0_i32 : i32, i32
  }
}

</mosaic_0001>

<llo_original>
// kernel: mlp_forward.1
$region0: #{mlp_forward.1}
  #allocation0 [shape = 'u32[]', space=smem, size = 0x4, offset = 0x4, fixed_abs, tag = 'smem constant byte address 0x4 - core index']
  #allocation1 [shape = 'u32[72,128]{1,0:T(1,128)}', space=vmem, size = 0x9000, scoped, tag = 'internal scratch']
  #allocation2 [shape = 'f32[128,128]{1,0:T(8,128)}', space=vmem, size = 0x10000, scoped, tag = 'scratch operand']
  %s0 = inlined_call_operand.vmem [shape: f32[128,128], index: 0, kind: input, shape index: {}]
  %s1 = inlined_call_operand.vmem [shape: f32[128,256], index: 1, kind: input, shape index: {}]
  %s2 = inlined_call_operand.vmem [shape: f32[1,256], index: 2, kind: input, shape index: {}]
  %s3 = inlined_call_operand.vmem [shape: f32[256,128], index: 3, kind: input, shape index: {}]
  %s4 = inlined_call_operand.vmem [shape: f32[1,128], index: 4, kind: input, shape index: {}]
  %s5 = inlined_call_operand.vmem [shape: f32[128,128], index: 5, kind: output, shape index: {}]
  %s6 = sld [smem:[#allocation0]]
  $region99: #{mlp_forward.1} parent=0
    _
  %s8 = ssub.s32 1, %s6
  %s9 = scalar_select 0, %s8, %s6
  $region1: #{mlp_forward.1} parent=0
    #allocation3 [shape = 'u8[131072]{0}', space=vmem, size = 0x20000, scoped, tag = 'input window, operand 1']
    loop: start=0, step=1, limit=4
    $region2: #{mlp_forward.1} parent=1 // loop_pre_header
      _
    $region3: #{mlp_forward.1} parent=1 // loop_header
      %s11 = sphi 0, %s15
      %p12 = scmp.ge.s32.totalorder %s11, 4
      %s18 = sphi 0, %s30
      %s19 = sphi 0, %s26
      %s20 = sphi 0, %s18
      %s21 = sphi 0, %s19
      %s22 = sphi 0, %s20
      %s23 = sphi 0, %s21
      %s33 = sphi 0, %s35
      %s36 = sphi 0, %s33
      %s37 = sphi 0, %s36
      %s53 = sphi 0, %s37
      %s59 = sphi 0, %s61
      %s62 = sphi 0, %s59
      %s63 = sphi 0, %s62
      %s79 = sphi 0, %s63
      %s85 = sphi 0, %s87
      %s88 = sphi 0, %s85
      %s89 = sphi 0, %s88
      %s105 = sphi 0, %s89
      %s111 = sphi 0, %s113
      %s114 = sphi 0, %s111
      %s115 = sphi 0, %s114
      %s131 = sphi 0, %s115
      %s135 = sphi 0, %s135
      %s137 = sphi 0, %s135
      %s138 = sphi 0, %s137
      %s152 = sphi 0, %s138
      %s158 = sphi 0, %s160
      %s161 = sphi 0, %s158
      %s162 = sphi 0, %s161
      %s178 = sphi 0, %s162
    $region4: #{mlp_forward.1} parent=1 // loop_header_branch
      %14 = sbr.rel (%p12) target = $region8
    $region5: #{mlp_forward.1} parent=1 // loop_body
      %s16 = ssub.s32 %s11, 1
      %s17 = ssub.s32 %s11, 2
      %s24 = sadd.s32 1, %s19
      %p25 = scmp.ge.s32.totalorder %s24, 2
      %s26 = scalar_select %p25, 0, %s24
      %s27 = sadd.s32 1, %s18
      %s28 = scalar_select %p25, %s27, %s18
      %p29 = scmp.ge.s32.totalorder %s28, 1
      %s30 = scalar_select %p29, 0, %s28
      %s31 = ssub.s32 %s18, %s30
      %p32 = scmp.eq.s32.totalorder %s31, 0
      %s34 = sadd.s32 %s33, 1
      %s35 = scalar_select %p32, %s33, %s34
      %p38 = pneg %p32
      %p39 = scmp.eq.s32.totalorder %s11, 1
      %p40 = por %p38, %p39
      %p41 = scmp.ne.s32.totalorder %s33, %s36
      %p42 = scmp.eq.s32.totalorder %s11, 0
      %p43 = por %p41, %p42
      %p44 = scmp.ne.s32.totalorder %s33, %s36
      %p45 = scmp.eq.s32.totalorder %s16, 1
      %p46 = por %p44, %p45
      %p47 = scmp.ne.s32.totalorder %s36, %s37
      %p48 = scmp.eq.s32.totalorder %s16, 0
      %p49 = por %p47, %p48
      %p50 = scmp.ne.s32.totalorder %s36, %s37
      %p51 = scmp.eq.s32.totalorder %s17, 1
      %p52 = por %p50, %p51
      %p54 = scmp.ne.s32.totalorder %s37, %s53
      %p55 = scmp.eq.s32.totalorder %s17, 0
      %p56 = por %p54, %p55
      %s57 = ssub.s32 %s19, %s26
      %p58 = scmp.eq.s32.totalorder %s57, 0
      %s60 = sadd.s32 %s59, 1
      %s61 = scalar_select %p58, %s59, %s60
      %p64 = pneg %p58
      %p65 = scmp.eq.s32.totalorder %s11, 1
      %p66 = por %p64, %p65
      %p67 = scmp.ne.s32.totalorder %s59, %s62
      %p68 = scmp.eq.s32.totalorder %s11, 0
      %p69 = por %p67, %p68
      %p70 = scmp.ne.s32.totalorder %s59, %s62
      %p71 = scmp.eq.s32.totalorder %s16, 1
      %p72 = por %p70, %p71
      %p73 = scmp.ne.s32.totalorder %s62, %s63
      %p74 = scmp.eq.s32.totalorder %s16, 0
      %p75 = por %p73, %p74
      %p76 = scmp.ne.s32.totalorder %s62, %s63
      %p77 = scmp.eq.s32.totalorder %s17, 1
      %p78 = por %p76, %p77
      %p80 = scmp.ne.s32.totalorder %s63, %s79
      %p81 = scmp.eq.s32.totalorder %s17, 0
      %p82 = por %p80, %p81
      %s83 = ssub.s32 %s19, %s26
      %p84 = scmp.eq.s32.totalorder %s83, 0
      %s86 = sadd.s32 %s85, 1
      %s87 = scalar_select %p84, %s85, %s86
      %p90 = pneg %p84
      %p91 = scmp.eq.s32.totalorder %s11, 1
      %p92 = por %p90, %p91
      %p93 = scmp.ne.s32.totalorder %s85, %s88
      %p94 = scmp.eq.s32.totalorder %s11, 0
      %p95 = por %p93, %p94
      %p96 = scmp.ne.s32.totalorder %s85, %s88
      %p97 = scmp.eq.s32.totalorder %s16, 1
      %p98 = por %p96, %p97
      %p99 = scmp.ne.s32.totalorder %s88, %s89
      %p100 = scmp.eq.s32.totalorder %s16, 0
      %p101 = por %p99, %p100
      %p102 = scmp.ne.s32.totalorder %s88, %s89
      %p103 = scmp.eq.s32.totalorder %s17, 1
      %p104 = por %p102, %p103
      %p106 = scmp.ne.s32.totalorder %s89, %s105
      %p107 = scmp.eq.s32.totalorder %s17, 0
      %p108 = por %p106, %p107
      %s109 = ssub.s32 %s19, %s26
      %p110 = scmp.eq.s32.totalorder %s109, 0
      %s112 = sadd.s32 %s111, 1
      %s113 = scalar_select %p110, %s111, %s112
      %p116 = pneg %p110
      %p117 = scmp.eq.s32.totalorder %s11, 1
      %p118 = por %p116, %p117
      %p119 = scmp.ne.s32.totalorder %s111, %s114
      %p120 = scmp.eq.s32.totalorder %s11, 0
      %p121 = por %p119, %p120
      %p122 = scmp.ne.s32.totalorder %s111, %s114
      %p123 = scmp.eq.s32.totalorder %s16, 1
      %p124 = por %p122, %p123
      %p125 = scmp.ne.s32.totalorder %s114, %s115
      %p126 = scmp.eq.s32.totalorder %s16, 0
      %p127 = por %p125, %p126
      %p128 = scmp.ne.s32.totalorder %s114, %s115
      %p129 = scmp.eq.s32.totalorder %s17, 1
      %p130 = por %p128, %p129
      %p132 = scmp.ne.s32.totalorder %s115, %s131
      %p133 = scmp.eq.s32.totalorder %s17, 0
      %p134 = por %p132, %p133
      %s136 = sadd.s32 %s135, 1
      %p139 = scmp.eq.s32.totalorder %s11, 1
      %p140 = scmp.ne.s32.totalorder %s135, %s137
      %p141 = scmp.eq.s32.totalorder %s11, 0
      %p142 = por %p140, %p141
      %p143 = scmp.ne.s32.totalorder %s135, %s137
      %p144 = scmp.eq.s32.totalorder %s16, 1
      %p145 = por %p143, %p144
      %p146 = scmp.ne.s32.totalorder %s137, %s138
      %p147 = scmp.eq.s32.totalorder %s16, 0
      %p148 = por %p146, %p147
      %p149 = scmp.ne.s32.totalorder %s137, %s138
      %p150 = scmp.eq.s32.totalorder %s17, 1
      %p151 = por %p149, %p150
      %p153 = scmp.ne.s32.totalorder %s138, %s152
      %p154 = scmp.eq.s32.totalorder %s17, 0
      %p155 = por %p153, %p154
      %s156 = ssub.s32 %s18, %s30
      %p157 = scmp.eq.s32.totalorder %s156, 0
      %s159 = sadd.s32 %s158, 1
      %s160 = scalar_select %p157, %s158, %s159
      %p163 = pneg %p157
      %p164 = scmp.eq.s32.totalorder %s11, 1
      %p165 = por %p163, %p164
      %p166 = scmp.ne.s32.totalorder %s158, %s161
      %p167 = scmp.eq.s32.totalorder %s11, 0
      %p168 = por %p166, %p167
      %p169 = scmp.ne.s32.totalorder %s158, %s161
      %p170 = scmp.eq.s32.totalorder %s16, 1
      %p171 = por %p169, %p170
      %p172 = scmp.ne.s32.totalorder %s161, %s162
      %p173 = scmp.eq.s32.totalorder %s16, 0
      %p174 = por %p172, %p173
      %p175 = scmp.ne.s32.totalorder %s161, %s162
      %p176 = scmp.eq.s32.totalorder %s17, 1
      %p177 = por %p175, %p176
      %p179 = scmp.ne.s32.totalorder %s162, %s178
      %p180 = scmp.eq.s32.totalorder %s17, 0
      %p181 = por %p179, %p180
      %p182 = scmp.le.s32.totalorder 1, %s11
      %p183 = scmp.lt.s32.totalorder %s11, 3
      %p184 = pnand %p182, %p183
      %p185 = pneg %p184
      // Predicated region
      $region9: #{mlp_forward.1} parent=5 // pred_check
        _
      $region10: #{mlp_forward.1} parent=5 // pred_check_branch
        %187 = sbr.rel (%p184) target = $region12
      $region11: #{mlp_forward.1} parent=5 // pred_region
        %s188 = ssub.s32 %s11, 1
        // Predicated region
        $region13: #{mlp_forward.1} parent=11 // pred_check
          %p189 = pneg %p49
        $region14: #{mlp_forward.1} parent=11 // pred_check_branch
          %191 = sbr.rel (%p189) target = $region16
        $region15: #{mlp_forward.1} parent=11 // pred_region
          %s192 = smul.u32 16, %s20
          %p193 = scmp.lt.s32.totalorder %s192, 15
          %s194 = scalar_select %p193, %s192, 15
          %s195 = smul.addr %s194, 8
          %s196 = scalar_lea.vmem %s0, %s195
          %s197 = smul.u32 16, %s20
        $region16: #{mlp_forward.1} parent=11 // pred_fallthru
          _
        // Predicated region
        $region17: #{mlp_forward.1} parent=11 // pred_check
          %p198 = pneg %p148
        $region18: #{mlp_forward.1} parent=11 // pred_check_branch
          %200 = sbr.rel (%p198) target = $region20
        $region19: #{mlp_forward.1} parent=11 // pred_region
          _
        $region20: #{mlp_forward.1} parent=11 // pred_fallthru
          _
      $region12: #{mlp_forward.1} parent=5 // pred_fallthru
        _
      %p201 = scmp.lt.s32.totalorder %s11, 2
      // Predicated region
      $region21: #{mlp_forward.1} parent=5 // pred_check
        %p202 = pneg %p201
      $region22: #{mlp_forward.1} parent=5 // pred_check_branch
        %204 = sbr.rel (%p202) target = $region24
      $region23: #{mlp_forward.1} parent=5 // pred_region
        // Predicated region
        $region25: #{mlp_forward.1} parent=23 // pred_check
          %p205 = pneg %p69
        $region26: #{mlp_forward.1} parent=23 // pred_check_branch
          %207 = sbr.rel (%p205) target = $region28
        $region27: #{mlp_forward.1} parent=23 // pred_region
          %s208 = sand.u32 %s59, 1
          %s209 = sand.u32 %s59, 1
          %s210 = smul.addr %s209, 128
          %s211 = scalar_lea.vmem [#allocation3], %s210
          %s212 = smul.addr %s19, 8
          %s213 = scalar_lea.vmem %s1, %s212
          // Predicated region
          $region29: #{mlp_forward.1} parent=27 // pred_check
            _
          $region30: #{mlp_forward.1} parent=27 // pred_check_branch
            %215 = sbr.rel (0) target = $region32
          $region31: #{mlp_forward.1} parent=27 // pred_region
            // Predicated region
            $region33: #{mlp_forward.1} parent=31 // pred_check
              _
            $region34: #{mlp_forward.1} parent=31 // pred_check_branch
              %217 = sbr.rel (0) target = $region36
            $region35: #{mlp_forward.1} parent=31 // pred_region
              // Predicated region
              $region48: #{mlp_forward.1} parent=35 // pred_check
                _
              $region49: #{mlp_forward.1} parent=35 // pred_check_branch
                %263 = sbr.rel (0) target = $region51
              $region50: #{mlp_forward.1} parent=35 // pred_region
                loop: start=0, step=1, limit=1
                $region52: #{mlp_forward.1} parent=50 // loop_pre_header
                  _
                $region53: #{mlp_forward.1} parent=50 // loop_header
                  %s265 = sphi 0, %s269
                  %p266 = scmp.ge.s32.totalorder %s265, 1
                  %s270 = sphi %s213, %s213
                  %s271 = sphi %s211, %s211
                $region54: #{mlp_forward.1} parent=50 // loop_header_branch
                  %268 = sbr.rel (%p266) target = $region58
                $region55: #{mlp_forward.1} parent=50 // loop_body
                  %v272 = vld [vmem:[%s270] sm:$0xff]
                  %273 = vst [vmem:[%s271] sm:$0xff] %v272
                  %v274 = vld [vmem:[%s270 + $0x10] sm:$0xff]
                  %275 = vst [vmem:[%s271 + $0x8] sm:$0xff] %v274
                  %v276 = vld [vmem:[%s270 + $0x20] sm:$0xff]
                  %277 = vst [vmem:[%s271 + $0x10] sm:$0xff] %v276
                  %v278 = vld [vmem:[%s270 + $0x30] sm:$0xff]
                  %279 = vst [vmem:[%s271 + $0x18] sm:$0xff] %v278
                  %v280 = vld [vmem:[%s270 + $0x40] sm:$0xff]
                  %281 = vst [vmem:[%s271 + $0x20] sm:$0xff] %v280
                  %v282 = vld [vmem:[%s270 + $0x50] sm:$0xff]
                  %283 = vst [vmem:[%s271 + $0x28] sm:$0xff] %v282
                  %v284 = vld [vmem:[%s270 + $0x60] sm:$0xff]
                  %285 = vst [vmem:[%s271 + $0x30] sm:$0xff] %v284
                  %v286 = vld [vmem:[%s270 + $0x70] sm:$0xff]
                  %287 = vst [vmem:[%s271 + $0x38] sm:$0xff] %v286
                  %v288 = vld [vmem:[%s270 + $0x80] sm:$0xff]
                  %289 = vst [vmem:[%s271 + $0x40] sm:$0xff] %v288
                  %v290 = vld [vmem:[%s270 + $0x90] sm:$0xff]
                  %291 = vst [vmem:[%s271 + $0x48] sm:$0xff] %v290
                  %v292 = vld [vmem:[%s270 + $0xa0] sm:$0xff]
                  %293 = vst [vmem:[%s271 + $0x50] sm:$0xff] %v292
                  %v294 = vld [vmem:[%s270 + $0xb0] sm:$0xff]
                  %295 = vst [vmem:[%s271 + $0x58] sm:$0xff] %v294
                  %v296 = vld [vmem:[%s270 + $0xc0] sm:$0xff]
                  %297 = vst [vmem:[%s271 + $0x60] sm:$0xff] %v296
                  %v298 = vld [vmem:[%s270 + $0xd0] sm:$0xff]
                  %299 = vst [vmem:[%s271 + $0x68] sm:$0xff] %v298
                  %v300 = vld [vmem:[%s270 + $0xe0] sm:$0xff]
                  %301 = vst [vmem:[%s271 + $0x70] sm:$0xff] %v300
                  %v302 = vld [vmem:[%s270 + $0xf0] sm:$0xff]
                  %303 = vst [vmem:[%s271 + $0x78] sm:$0xff] %v302
                $region56: #{mlp_forward.1} parent=50 // loop_footer
                  %s269 = sadd.s32 1, %s265
                $region57: #{mlp_forward.1} parent=50 // loop_footer_branch
                  %264 = sbr.rel target = $region53
                $region58: #{mlp_forward.1} parent=50 // loop_exit
                  _
              $region51: #{mlp_forward.1} parent=35 // pred_fallthru
                _
              // Predicated region
              $region59: #{mlp_forward.1} parent=35 // pred_check
                _
              $region60: #{mlp_forward.1} parent=35 // pred_check_branch
                %305 = sbr.rel target = $region62
              $region61: #{mlp_forward.1} parent=35 // pred_region
                _
              $region62: #{mlp_forward.1} parent=35 // pred_fallthru
                _
            $region36: #{mlp_forward.1} parent=31 // pred_fallthru
              _
            // Predicated region
            $region37: #{mlp_forward.1} parent=31 // pred_check
              _
            $region38: #{mlp_forward.1} parent=31 // pred_check_branch
              %219 = sbr.rel target = $region40
            $region39: #{mlp_forward.1} parent=31 // pred_region
              %s221 = ssub.s32 256, 1
              loop: start=0, step=1, limit=1
              $region41: #{mlp_forward.1} parent=39 // loop_pre_header
                _
              $region42: #{mlp_forward.1} parent=39 // loop_header
                %s223 = sphi 0, %s227
                %p224 = scmp.ge.s32.totalorder %s223, 1
                %s228 = sphi %s213, %s213
                %s229 = sphi %s211, %s211
              $region43: #{mlp_forward.1} parent=39 // loop_header_branch
                %226 = sbr.rel (%p224) target = $region47
              $region44: #{mlp_forward.1} parent=39 // loop_body
                %v230 = vld [vmem:[%s228] sm:%s221]
                %231 = vst [vmem:[%s229] sm:%s221] %v230
                %v232 = vld [vmem:[%s228 + $0x10] sm:%s221]
                %233 = vst [vmem:[%s229 + $0x8] sm:%s221] %v232
                %v234 = vld [vmem:[%s228 + $0x20] sm:%s221]
                %235 = vst [vmem:[%s229 + $0x10] sm:%s221] %v234
                %v236 = vld [vmem:[%s228 + $0x30] sm:%s221]
                %237 = vst [vmem:[%s229 + $0x18] sm:%s221] %v236
                %v238 = vld [vmem:[%s228 + $0x40] sm:%s221]
                %239 = vst [vmem:[%s229 + $0x20] sm:%s221] %v238
                %v240 = vld [vmem:[%s228 + $0x50] sm:%s221]
                %241 = vst [vmem:[%s229 + $0x28] sm:%s221] %v240
                %v242 = vld [vmem:[%s228 + $0x60] sm:%s221]
                %243 = vst [vmem:[%s229 + $0x30] sm:%s221] %v242
                %v244 = vld [vmem:[%s228 + $0x70] sm:%s221]
                %245 = vst [vmem:[%s229 + $0x38] sm:%s221] %v244
                %v246 = vld [vmem:[%s228 + $0x80] sm:%s221]
                %247 = vst [vmem:[%s229 + $0x40] sm:%s221] %v246
                %v248 = vld [vmem:[%s228 + $0x90] sm:%s221]
                %249 = vst [vmem:[%s229 + $0x48] sm:%s221] %v248
                %v250 = vld [vmem:[%s228 + $0xa0] sm:%s221]
                %251 = vst [vmem:[%s229 + $0x50] sm:%s221] %v250
                %v252 = vld [vmem:[%s228 + $0xb0] sm:%s221]
                %253 = vst [vmem:[%s229 + $0x58] sm:%s221] %v252
                %v254 = vld [vmem:[%s228 + $0xc0] sm:%s221]
                %255 = vst [vmem:[%s229 + $0x60] sm:%s221] %v254
                %v256 = vld [vmem:[%s228 + $0xd0] sm:%s221]
                %257 = vst [vmem:[%s229 + $0x68] sm:%s221] %v256
                %v258 = vld [vmem:[%s228 + $0xe0] sm:%s221]
                %259 = vst [vmem:[%s229 + $0x70] sm:%s221] %v258
                %v260 = vld [vmem:[%s228 + $0xf0] sm:%s221]
                %261 = vst [vmem:[%s229 + $0x78] sm:%s221] %v260
              $region45: #{mlp_forward.1} parent=39 // loop_footer
                %s227 = sadd.s32 1, %s223
              $region46: #{mlp_forward.1} parent=39 // loop_footer_branch
                %222 = sbr.rel target = $region42
              $region47: #{mlp_forward.1} parent=39 // loop_exit
                _
            $region40: #{mlp_forward.1} parent=31 // pred_fallthru
              _
          $region32: #{mlp_forward.1} parent=27 // pred_fallthru
            _
          %306 = vnop
        $region28: #{mlp_forward.1} parent=23 // pred_fallthru
          _
        // Predicated region
        $region63: #{mlp_forward.1} parent=23 // pred_check
          %p307 = pneg %p95
        $region64: #{mlp_forward.1} parent=23 // pred_check_branch
          %309 = sbr.rel (%p307) target = $region66
        $region65: #{mlp_forward.1} parent=23 // pred_region
          %p310 = scmp.lt.s32.totalorder %s19, 1
          %s311 = scalar_select %p310, %s19, 1
          %s312 = scalar_lea.vmem %s2, %s311
        $region66: #{mlp_forward.1} parent=23 // pred_fallthru
          _
        // Predicated region
        $region67: #{mlp_forward.1} parent=23 // pred_check
          %p313 = pneg %p121
        $region68: #{mlp_forward.1} parent=23 // pred_check_branch
          %315 = sbr.rel (%p313) target = $region70
        $region69: #{mlp_forward.1} parent=23 // pred_region
          %s316 = smul.u32 16, %s19
          %p317 = scmp.lt.s32.totalorder %s316, 31
          %s318 = scalar_select %p317, %s316, 31
          %s319 = smul.addr %s318, 8
          %s320 = scalar_lea.vmem %s3, %s319
          %s321 = smul.u32 16, %s19
        $region70: #{mlp_forward.1} parent=23 // pred_fallthru
          _
      $region24: #{mlp_forward.1} parent=5 // pred_fallthru
        _
      %p322 = scmp.le.s32.totalorder 1, %s11
      %p323 = scmp.lt.s32.totalorder %s11, 3
      %p324 = pnand %p322, %p323
      %p325 = pneg %p324
      // Predicated region
      $region71: #{mlp_forward.1} parent=5 // pred_check
        _
      $region72: #{mlp_forward.1} parent=5 // pred_check_branch
        %327 = sbr.rel (%p324) target = $region74
      $region73: #{mlp_forward.1} parent=5 // pred_region
        %s328 = ssub.s32 %s11, 1
        %s329 = sand.u32 %s62, 1
        %s330 = sand.u32 %s62, 1
        %s331 = smul.addr %s330, 128
        %s332 = scalar_lea.vmem [#allocation3], %s331
        // Predicated region
        $region75: #{mlp_forward.1} parent=73 // pred_check
          %p333 = pneg %p75
        $region76: #{mlp_forward.1} parent=73 // pred_check_branch
          %335 = sbr.rel (%p333) target = $region78
        $region77: #{mlp_forward.1} parent=73 // pred_region
          _
        $region78: #{mlp_forward.1} parent=73 // pred_fallthru
          _
        %s336 = smul.u32 16, %s20
        %p337 = scmp.lt.s32.totalorder %s336, 15
        %s338 = scalar_select %p337, %s336, 15
        %s339 = smul.addr %s338, 8
        %s340 = scalar_lea.vmem %s0, %s339
        %p341 = pneg %p49
        %p342 = pneg %p46
        %s343 = sand.u32 %s62, 1
        %s344 = sand.u32 %s62, 1
        %s345 = smul.addr %s344, 128
        %s346 = scalar_lea.vmem [#allocation3], %s345
        %p347 = pneg %p75
        %p348 = pneg %p72
        %p349 = scmp.lt.s32.totalorder %s21, 1
        %s350 = scalar_select %p349, %s21, 1
        %s351 = scalar_lea.vmem %s2, %s350
        %p352 = pneg %p101
        %p353 = pneg %p98
        %s354 = smul.u32 16, %s21
        %p355 = scmp.lt.s32.totalorder %s354, 31
        %s356 = scalar_select %p355, %s354, 31
        %s357 = smul.addr %s356, 8
        %s358 = scalar_lea.vmem %s3, %s357
        %p359 = pneg %p127
        %p360 = pneg %p124
        %p361 = pneg %p148
        %p362 = pneg %p145
        %p363 = pneg %p174
        %p364 = pneg %p171
        %s365 = smul.u32 16, %s20
        %p366 = scmp.lt.s32.totalorder %s365, 15
        %s367 = scalar_select %p366, %s365, 15
        %s368 = smul.addr %s367, 8
        %s369 = scalar_lea.vmem %s5, %s368
        %s370 = smul.u32 16, %s20
        %p371 = scmp.lt.s32.totalorder %s370, 15
        %s372 = scalar_select %p371, %s370, 15
        %s373 = smul.addr %s372, 8
        %s374 = scalar_lea.vmem %s0, %s373
        %s375 = smul.u32 16, %s20
        %p376 = scmp.lt.s32.totalorder %s21, 1
        %s377 = scalar_select %p376, %s21, 1
        %s378 = scalar_lea.vmem %s2, %s377
        %s379 = smul.u32 16, %s21
        %p380 = scmp.lt.s32.totalorder %s379, 31
        %s381 = scalar_select %p380, %s379, 31
        %s382 = smul.addr %s381, 8
        %s383 = scalar_lea.vmem %s3, %s382
        %s384 = smul.u32 16, %s21
        %s385 = smul.u32 16, %s20
        %p386 = scmp.lt.s32.totalorder %s385, 15
        %s387 = scalar_select %p386, %s385, 15
        %s388 = smul.addr %s387, 8
        %s389 = scalar_lea.vmem %s5, %s388
        %s390 = smul.u32 16, %s20
        %p391 = scmp.eq.s32.totalorder %s21, 0
        // Predicated region
        $region79: #{mlp_forward.1} parent=73 // pred_check
          %p392 = pneg %p391
        $region80: #{mlp_forward.1} parent=73 // pred_check_branch
          %394 = sbr.rel (%p392) target = $region82
        $region81: #{mlp_forward.1} parent=73 // pred_region
          %395 = vst [vmem:[#allocation2] sm:$0xff] 0.0
          %396 = vst [vmem:[#allocation2 + $0x8] sm:$0xff] 0.0
          %397 = vst [vmem:[#allocation2 + $0x10] sm:$0xff] 0.0
          %398 = vst [vmem:[#allocation2 + $0x18] sm:$0xff] 0.0
          %399 = vst [vmem:[#allocation2 + $0x20] sm:$0xff] 0.0
          %400 = vst [vmem:[#allocation2 + $0x28] sm:$0xff] 0.0
          %401 = vst [vmem:[#allocation2 + $0x30] sm:$0xff] 0.0
          %402 = vst [vmem:[#allocation2 + $0x38] sm:$0xff] 0.0
          %403 = vst [vmem:[#allocation2 + $0x40] sm:$0xff] 0.0
          %404 = vst [vmem:[#allocation2 + $0x48] sm:$0xff] 0.0
          %405 = vst [vmem:[#allocation2 + $0x50] sm:$0xff] 0.0
          %406 = vst [vmem:[#allocation2 + $0x58] sm:$0xff] 0.0
          %407 = vst [vmem:[#allocation2 + $0x60] sm:$0xff] 0.0
          %408 = vst [vmem:[#allocation2 + $0x68] sm:$0xff] 0.0
          %409 = vst [vmem:[#allocation2 + $0x70] sm:$0xff] 0.0
          %410 = vst [vmem:[#allocation2 + $0x78] sm:$0xff] 0.0
        $region82: #{mlp_forward.1} parent=73 // pred_fallthru
          _
        %v411 = vld [vmem:[%s374] sm:$0xff]
        %v412 = vld [vmem:[%s374 + $0x8] sm:$0xff]
        %v413 = vld [vmem:[%s374 + $0x10] sm:$0xff]
        %v414 = vld [vmem:[%s374 + $0x18] sm:$0xff]
        %v415 = vld [vmem:[%s374 + $0x20] sm:$0xff]
        %v416 = vld [vmem:[%s374 + $0x28] sm:$0xff]
        %v417 = vld [vmem:[%s374 + $0x30] sm:$0xff]
        %v418 = vld [vmem:[%s374 + $0x38] sm:$0xff]
        %v419 = vld [vmem:[%s374 + $0x40] sm:$0xff]
        %v420 = vld [vmem:[%s374 + $0x48] sm:$0xff]
        %v421 = vld [vmem:[%s374 + $0x50] sm:$0xff]
        %v422 = vld [vmem:[%s374 + $0x58] sm:$0xff]
        %v423 = vld [vmem:[%s374 + $0x60] sm:$0xff]
        %v424 = vld [vmem:[%s374 + $0x68] sm:$0xff]
        %v425 = vld [vmem:[%s374 + $0x70] sm:$0xff]
        %v426 = vld [vmem:[%s374 + $0x78] sm:$0xff]
        %v427 = vld [vmem:[%s332] sm:$0xff]
        %v428 = vld [vmem:[%s332 + $0x8] sm:$0xff]
        %v429 = vld [vmem:[%s332 + $0x10] sm:$0xff]
        %v430 = vld [vmem:[%s332 + $0x18] sm:$0xff]
        %v431 = vld [vmem:[%s332 + $0x20] sm:$0xff]
        %v432 = vld [vmem:[%s332 + $0x28] sm:$0xff]
        %v433 = vld [vmem:[%s332 + $0x30] sm:$0xff]
        %v434 = vld [vmem:[%s332 + $0x38] sm:$0xff]
        %v435 = vld [vmem:[%s332 + $0x40] sm:$0xff]
        %v436 = vld [vmem:[%s332 + $0x48] sm:$0xff]
        %v437 = vld [vmem:[%s332 + $0x50] sm:$0xff]
        %v438 = vld [vmem:[%s332 + $0x58] sm:$0xff]
        %v439 = vld [vmem:[%s332 + $0x60] sm:$0xff]
        %v440 = vld [vmem:[%s332 + $0x68] sm:$0xff]
        %v441 = vld [vmem:[%s332 + $0x70] sm:$0xff]
        %v442 = vld [vmem:[%s332 + $0x78] sm:$0xff]
        %v443 = vld [vmem:[%s378] sm:$0x1]
        %v445 = vperm.slane %v443, 0
        %447 = vmatpush.msra.mxu0 %v442
        %448 = vmatpush.msra.mxu0 %v441
        %449 = vmatpush.msra.mxu0 %v440
        %450 = vmatpush.msra.mxu0 %v439
        %451 = vmatpush.msra.mxu0 %v438
        %452 = vmatpush.msra.mxu0 %v437
        %453 = vmatpush.msra.mxu0 %v436
        %454 = vmatpush.msra.mxu0 %v435
        %455 = vmatpush.msra.mxu0 %v434
        %456 = vmatpush.msra.mxu0 %v433
        %457 = vmatpush.msra.mxu0 %v432
        %458 = vmatpush.msra.mxu0 %v431
        %459 = vmatpush.msra.mxu0 %v430
        %460 = vmatpush.msra.mxu0 %v429
        %461 = vmatpush.msra.mxu0 %v428
        %462 = vmatpush.msra.mxu0 %v427
        %463 = vmatmul.f32.gmra.mxu0 %v411
        %v464 = vpop.f32.mrf.mxu0
        %v465 = vadd.f32 %v445, %v464
        %466 = vmatmul.f32.gmra.mxu0 %v412
        %v467 = vpop.f32.mrf.mxu0
        %v468 = vadd.f32 %v445, %v467
        %469 = vmatmul.f32.gmra.mxu0 %v413
        %v470 = vpop.f32.mrf.mxu0
        %v471 = vadd.f32 %v445, %v470
        %472 = vmatmul.f32.gmra.mxu0 %v414
        %v473 = vpop.f32.mrf.mxu0
        %v474 = vadd.f32 %v445, %v473
        %475 = vmatmul.f32.gmra.mxu0 %v415
        %v476 = vpop.f32.mrf.mxu0
        %v477 = vadd.f32 %v445, %v476
        %478 = vmatmul.f32.gmra.mxu0 %v416
        %v479 = vpop.f32.mrf.mxu0
        %v480 = vadd.f32 %v445, %v479
        %481 = vmatmul.f32.gmra.mxu0 %v417
        %v482 = vpop.f32.mrf.mxu0
        %v483 = vadd.f32 %v445, %v482
        %484 = vmatmul.f32.gmra.mxu0 %v418
        %v485 = vpop.f32.mrf.mxu0
        %v486 = vadd.f32 %v445, %v485
        %487 = vmatmul.f32.gmra.mxu0 %v419
        %v488 = vpop.f32.mrf.mxu0
        %v489 = vadd.f32 %v445, %v488
        %490 = vmatmul.f32.gmra.mxu0 %v420
        %v491 = vpop.f32.mrf.mxu0
        %v492 = vadd.f32 %v445, %v491
        %493 = vmatmul.f32.gmra.mxu0 %v421
        %v494 = vpop.f32.mrf.mxu0
        %v495 = vadd.f32 %v445, %v494
        %496 = vmatmul.f32.gmra.mxu0 %v422
        %v497 = vpop.f32.mrf.mxu0
        %v498 = vadd.f32 %v445, %v497
        %499 = vmatmul.f32.gmra.mxu0 %v423
        %v500 = vpop.f32.mrf.mxu0
        %v501 = vadd.f32 %v445, %v500
        %502 = vmatmul.f32.gmra.mxu0 %v424
        %v503 = vpop.f32.mrf.mxu0
        %v504 = vadd.f32 %v445, %v503
        %505 = vmatmul.f32.gmra.mxu0 %v425
        %v506 = vpop.f32.mrf.mxu0
        %v507 = vadd.f32 %v445, %v506
        %508 = vmatmul.f32.gmra.mxu0 %v426
        %v509 = vpop.f32.mrf.mxu0
        %v510 = vadd.f32 %v445, %v509
        %511 = vdwg.mxu0
        %v512 = vmul.f32 %v465, 0.5
        %v513 = vmul.f32 %v468, 0.5
        %v514 = vmul.f32 %v471, 0.5
        %v515 = vmul.f32 %v474, 0.5
        %v516 = vmul.f32 %v477, 0.5
        %v517 = vmul.f32 %v480, 0.5
        %v518 = vmul.f32 %v483, 0.5
        %v519 = vmul.f32 %v486, 0.5
        %v520 = vmul.f32 %v489, 0.5
        %v521 = vmul.f32 %v492, 0.5
        %v522 = vmul.f32 %v495, 0.5
        %v523 = vmul.f32 %v498, 0.5
        %v524 = vmul.f32 %v501, 0.5
        %v525 = vmul.f32 %v504, 0.5
        %v526 = vmul.f32 %v507, 0.5
        %v527 = vmul.f32 %v510, 0.5
        %v528 = vmul.f32 %v465, 0.70710677
        %v529 = vmul.f32 %v468, 0.70710677
        %v530 = vmul.f32 %v471, 0.70710677
        %v531 = vmul.f32 %v474, 0.70710677
        %v532 = vmul.f32 %v477, 0.70710677
        %v533 = vmul.f32 %v480, 0.70710677
        %v534 = vmul.f32 %v483, 0.70710677
        %v535 = vmul.f32 %v486, 0.70710677
        %v536 = vmul.f32 %v489, 0.70710677
        %v537 = vmul.f32 %v492, 0.70710677
        %v538 = vmul.f32 %v495, 0.70710677
        %v539 = vmul.f32 %v498, 0.70710677
        %v540 = vmul.f32 %v501, 0.70710677
        %v541 = vmul.f32 %v504, 0.70710677
        %v542 = vmul.f32 %v507, 0.70710677
        %v543 = vmul.f32 %v510, 0.70710677
        %v544 = vmul.f32 %v528, %v528
        %v545 = vmin.f32 16.0, %v544
        %v546 = vmul.f32 %v545, 2.1237322e-06
        %v547 = vadd.f32 %v546, 0.00028619796
        %v548 = vmul.f32 %v545, %v547
        %v549 = vadd.f32 %v548, 0.0036580483
        %v550 = vmul.f32 %v545, %v549
        %v551 = vadd.f32 %v550, 0.05243302
        %v552 = vmul.f32 %v545, %v551
        %v553 = vadd.f32 %v552, 0.18741608
        %v554 = vmul.f32 %v545, %v553
        %v555 = vadd.f32 %v554, 1.1283791
        %v556 = vmul.f32 %v528, %v555
        %v557 = vmul.f32 %v545, 3.8918573e-05
        %v558 = vadd.f32 %v557, 0.001143296
        %v559 = vmul.f32 %v545, %v558
        %v560 = vadd.f32 %v559, 0.014752088
        %v561 = vmul.f32 %v545, %v560
        %v562 = vadd.f32 %v561, 0.112945676
        %v563 = vmul.f32 %v545, %v562
        %v564 = vadd.f32 %v563, 0.4994258
        %v565 = vmul.f32 %v545, %v564
        %v566 = vadd.f32 %v565, 1.0
        %v567 = vrcp.pop %v566
        %v568 = vmul.f32 %v566, %v567
        %v569 = vsub.f32 1.0, %v568
        %v570 = vmul.f32 %v567, %v569
        %v571 = vadd.f32 %v567, %v570
        %vm572 = vweird.f32 %v566
        %vm573 = vweird.f32 %v567
        %vm574 = vmor %vm572, %vm573
        %v575 = vsel %vm574, %v567, %v571
        %v576 = vand.u32 2147483647, %v566
        %vm577 = vcmp.eq.f32.partialorder %v576, 8.507059e+37
        %v578 = vand.u32 %v566, 2147483648
        %v579 = vor.u32 1.1754944e-38, %v578
        %v580 = vsel %vm577, %v579, %v575
        %v581 = vmul.f32 %v556, %v580
        %v582 = vmin.f32 %v581, 1.0
        %v583 = vmax.f32 %v582, -1.0
        %v584 = vmul.f32 %v529, %v529
        %v585 = vmin.f32 16.0, %v584
        %v586 = vmul.f32 %v585, 2.1237322e-06
        %v587 = vadd.f32 %v586, 0.00028619796
        %v588 = vmul.f32 %v585, %v587
        %v589 = vadd.f32 %v588, 0.0036580483
        %v590 = vmul.f32 %v585, %v589
        %v591 = vadd.f32 %v590, 0.05243302
        %v592 = vmul.f32 %v585, %v591
        %v593 = vadd.f32 %v592, 0.18741608
        %v594 = vmul.f32 %v585, %v593
        %v595 = vadd.f32 %v594, 1.1283791
        %v596 = vmul.f32 %v529, %v595
        %v597 = vmul.f32 %v585, 3.8918573e-05
        %v598 = vadd.f32 %v597, 0.001143296
        %v599 = vmul.f32 %v585, %v598
        %v600 = vadd.f32 %v599, 0.014752088
        %v601 = vmul.f32 %v585, %v600
        %v602 = vadd.f32 %v601, 0.112945676
        %v603 = vmul.f32 %v585, %v602
        %v604 = vadd.f32 %v603, 0.4994258
        %v605 = vmul.f32 %v585, %v604
        %v606 = vadd.f32 %v605, 1.0
        %v607 = vrcp.pop %v606
        %v608 = vmul.f32 %v606, %v607
        %v609 = vsub.f32 1.0, %v608
        %v610 = vmul.f32 %v607, %v609
        %v611 = vadd.f32 %v607, %v610
        %vm612 = vweird.f32 %v606
        %vm613 = vweird.f32 %v607
        %vm614 = vmor %vm612, %vm613
        %v615 = vsel %vm614, %v607, %v611
        %v616 = vand.u32 2147483647, %v606
        %vm617 = vcmp.eq.f32.partialorder %v616, 8.507059e+37
        %v618 = vand.u32 %v606, 2147483648
        %v619 = vor.u32 1.1754944e-38, %v618
        %v620 = vsel %vm617, %v619, %v615
        %v621 = vmul.f32 %v596, %v620
        %v622 = vmin.f32 %v621, 1.0
        %v623 = vmax.f32 %v622, -1.0
        %v624 = vmul.f32 %v530, %v530
        %v625 = vmin.f32 16.0, %v624
        %v626 = vmul.f32 %v625, 2.1237322e-06
        %v627 = vadd.f32 %v626, 0.00028619796
        %v628 = vmul.f32 %v625, %v627
        %v629 = vadd.f32 %v628, 0.0036580483
        %v630 = vmul.f32 %v625, %v629
        %v631 = vadd.f32 %v630, 0.05243302
        %v632 = vmul.f32 %v625, %v631
        %v633 = vadd.f32 %v632, 0.18741608
        %v634 = vmul.f32 %v625, %v633
        %v635 = vadd.f32 %v634, 1.1283791
        %v636 = vmul.f32 %v530, %v635
        %v637 = vmul.f32 %v625, 3.8918573e-05
        %v638 = vadd.f32 %v637, 0.001143296
        %v639 = vmul.f32 %v625, %v638
        %v640 = vadd.f32 %v639, 0.014752088
        %v641 = vmul.f32 %v625, %v640
        %v642 = vadd.f32 %v641, 0.112945676
        %v643 = vmul.f32 %v625, %v642
        %v644 = vadd.f32 %v643, 0.4994258
        %v645 = vmul.f32 %v625, %v644
        %v646 = vadd.f32 %v645, 1.0
        %v647 = vrcp.pop %v646
        %v648 = vmul.f32 %v646, %v647
        %v649 = vsub.f32 1.0, %v648
        %v650 = vmul.f32 %v647, %v649
        %v651 = vadd.f32 %v647, %v650
        %vm652 = vweird.f32 %v646
        %vm653 = vweird.f32 %v647
        %vm654 = vmor %vm652, %vm653
        %v655 = vsel %vm654, %v647, %v651
        %v656 = vand.u32 2147483647, %v646
        %vm657 = vcmp.eq.f32.partialorder %v656, 8.507059e+37
        %v658 = vand.u32 %v646, 2147483648
        %v659 = vor.u32 1.1754944e-38, %v658
        %v660 = vsel %vm657, %v659, %v655
        %v661 = vmul.f32 %v636, %v660
        %v662 = vmin.f32 %v661, 1.0
        %v663 = vmax.f32 %v662, -1.0
        %v664 = vmul.f32 %v531, %v531
        %v665 = vmin.f32 16.0, %v664
        %v666 = vmul.f32 %v665, 2.1237322e-06
        %v667 = vadd.f32 %v666, 0.00028619796
        %v668 = vmul.f32 %v665, %v667
        %v669 = vadd.f32 %v668, 0.0036580483
        %v670 = vmul.f32 %v665, %v669
        %v671 = vadd.f32 %v670, 0.05243302
        %v672 = vmul.f32 %v665, %v671
        %v673 = vadd.f32 %v672, 0.18741608
        %v674 = vmul.f32 %v665, %v673
        %v675 = vadd.f32 %v674, 1.1283791
        %v676 = vmul.f32 %v531, %v675
        %v677 = vmul.f32 %v665, 3.8918573e-05
        %v678 = vadd.f32 %v677, 0.001143296
        %v679 = vmul.f32 %v665, %v678
        %v680 = vadd.f32 %v679, 0.014752088
        %v681 = vmul.f32 %v665, %v680
        %v682 = vadd.f32 %v681, 0.112945676
        %v683 = vmul.f32 %v665, %v682
        %v684 = vadd.f32 %v683, 0.4994258
        %v685 = vmul.f32 %v665, %v684
        %v686 = vadd.f32 %v685, 1.0
        %v687 = vrcp.pop %v686
        %v688 = vmul.f32 %v686, %v687
        %v689 = vsub.f32 1.0, %v688
        %v690 = vmul.f32 %v687, %v689
        %v691 = vadd.f32 %v687, %v690
        %vm692 = vweird.f32 %v686
        %vm693 = vweird.f32 %v687
        %vm694 = vmor %vm692, %vm693
        %v695 = vsel %vm694, %v687, %v691
        %v696 = vand.u32 2147483647, %v686
        %vm697 = vcmp.eq.f32.partialorder %v696, 8.507059e+37
        %v698 = vand.u32 %v686, 2147483648
        %v699 = vor.u32 1.1754944e-38, %v698
        %v700 = vsel %vm697, %v699, %v695
        %v701 = vmul.f32 %v676, %v700
        %v702 = vmin.f32 %v701, 1.0
        %v703 = vmax.f32 %v702, -1.0
        %v704 = vmul.f32 %v532, %v532
        %v705 = vmin.f32 16.0, %v704
        %v706 = vmul.f32 %v705, 2.1237322e-06
        %v707 = vadd.f32 %v706, 0.00028619796
        %v708 = vmul.f32 %v705, %v707
        %v709 = vadd.f32 %v708, 0.0036580483
        %v710 = vmul.f32 %v705, %v709
        %v711 = vadd.f32 %v710, 0.05243302
        %v712 = vmul.f32 %v705, %v711
        %v713 = vadd.f32 %v712, 0.18741608
        %v714 = vmul.f32 %v705, %v713
        %v715 = vadd.f32 %v714, 1.1283791
        %v716 = vmul.f32 %v532, %v715
        %v717 = vmul.f32 %v705, 3.8918573e-05
        %v718 = vadd.f32 %v717, 0.001143296
        %v719 = vmul.f32 %v705, %v718
        %v720 = vadd.f32 %v719, 0.014752088
        %v721 = vmul.f32 %v705, %v720
        %v722 = vadd.f32 %v721, 0.112945676
        %v723 = vmul.f32 %v705, %v722
        %v724 = vadd.f32 %v723, 0.4994258
        %v725 = vmul.f32 %v705, %v724
        %v726 = vadd.f32 %v725, 1.0
        %v727 = vrcp.pop %v726
        %v728 = vmul.f32 %v726, %v727
        %v729 = vsub.f32 1.0, %v728
        %v730 = vmul.f32 %v727, %v729
        %v731 = vadd.f32 %v727, %v730
        %vm732 = vweird.f32 %v726
        %vm733 = vweird.f32 %v727
        %vm734 = vmor %vm732, %vm733
        %v735 = vsel %vm734, %v727, %v731
        %v736 = vand.u32 2147483647, %v726
        %vm737 = vcmp.eq.f32.partialorder %v736, 8.507059e+37
        %v738 = vand.u32 %v726, 2147483648
        %v739 = vor.u32 1.1754944e-38, %v738
        %v740 = vsel %vm737, %v739, %v735
        %v741 = vmul.f32 %v716, %v740
        %v742 = vmin.f32 %v741, 1.0
        %v743 = vmax.f32 %v742, -1.0
        %v744 = vmul.f32 %v533, %v533
        %v745 = vmin.f32 16.0, %v744
        %v746 = vmul.f32 %v745, 2.1237322e-06
        %v747 = vadd.f32 %v746, 0.00028619796
        %v748 = vmul.f32 %v745, %v747
        %v749 = vadd.f32 %v748, 0.0036580483
        %v750 = vmul.f32 %v745, %v749
        %v751 = vadd.f32 %v750, 0.05243302
        %v752 = vmul.f32 %v745, %v751
        %v753 = vadd.f32 %v752, 0.18741608
        %v754 = vmul.f32 %v745, %v753
        %v755 = vadd.f32 %v754, 1.1283791
        %v756 = vmul.f32 %v533, %v755
        %v757 = vmul.f32 %v745, 3.8918573e-05
        %v758 = vadd.f32 %v757, 0.001143296
        %v759 = vmul.f32 %v745, %v758
        %v760 = vadd.f32 %v759, 0.014752088
        %v761 = vmul.f32 %v745, %v760
        %v762 = vadd.f32 %v761, 0.112945676
        %v763 = vmul.f32 %v745, %v762
        %v764 = vadd.f32 %v763, 0.4994258
        %v765 = vmul.f32 %v745, %v764
        %v766 = vadd.f32 %v765, 1.0
        %v767 = vrcp.pop %v766
        %v768 = vmul.f32 %v766, %v767
        %v769 = vsub.f32 1.0, %v768
        %v770 = vmul.f32 %v767, %v769
        %v771 = vadd.f32 %v767, %v770
        %vm772 = vweird.f32 %v766
        %vm773 = vweird.f32 %v767
        %vm774 = vmor %vm772, %vm773
        %v775 = vsel %vm774, %v767, %v771
        %v776 = vand.u32 2147483647, %v766
        %vm777 = vcmp.eq.f32.partialorder %v776, 8.507059e+37
        %v778 = vand.u32 %v766, 2147483648
        %v779 = vor.u32 1.1754944e-38, %v778
        %v780 = vsel %vm777, %v779, %v775
        %v781 = vmul.f32 %v756, %v780
        %v782 = vmin.f32 %v781, 1.0
        %v783 = vmax.f32 %v782, -1.0
        %v784 = vmul.f32 %v534, %v534
        %v785 = vmin.f32 16.0, %v784
        %v786 = vmul.f32 %v785, 2.1237322e-06
        %v787 = vadd.f32 %v786, 0.00028619796
        %v788 = vmul.f32 %v785, %v787
        %v789 = vadd.f32 %v788, 0.0036580483
        %v790 = vmul.f32 %v785, %v789
        %v791 = vadd.f32 %v790, 0.05243302
        %v792 = vmul.f32 %v785, %v791
        %v793 = vadd.f32 %v792, 0.18741608
        %v794 = vmul.f32 %v785, %v793
        %v795 = vadd.f32 %v794, 1.1283791
        %v796 = vmul.f32 %v534, %v795
        %v797 = vmul.f32 %v785, 3.8918573e-05
        %v798 = vadd.f32 %v797, 0.001143296
        %v799 = vmul.f32 %v785, %v798
        %v800 = vadd.f32 %v799, 0.014752088
        %v801 = vmul.f32 %v785, %v800
        %v802 = vadd.f32 %v801, 0.112945676
        %v803 = vmul.f32 %v785, %v802
        %v804 = vadd.f32 %v803, 0.4994258
        %v805 = vmul.f32 %v785, %v804
        %v806 = vadd.f32 %v805, 1.0
        %v807 = vrcp.pop %v806
        %v808 = vmul.f32 %v806, %v807
        %v809 = vsub.f32 1.0, %v808
        %v810 = vmul.f32 %v807, %v809
        %v811 = vadd.f32 %v807, %v810
        %vm812 = vweird.f32 %v806
        %vm813 = vweird.f32 %v807
        %vm814 = vmor %vm812, %vm813
        %v815 = vsel %vm814, %v807, %v811
        %v816 = vand.u32 2147483647, %v806
        %vm817 = vcmp.eq.f32.partialorder %v816, 8.507059e+37
        %v818 = vand.u32 %v806, 2147483648
        %v819 = vor.u32 1.1754944e-38, %v818
        %v820 = vsel %vm817, %v819, %v815
        %v821 = vmul.f32 %v796, %v820
        %v822 = vmin.f32 %v821, 1.0
        %v823 = vmax.f32 %v822, -1.0
        %v824 = vmul.f32 %v535, %v535
        %v825 = vmin.f32 16.0, %v824
        %v826 = vmul.f32 %v825, 2.1237322e-06
        %v827 = vadd.f32 %v826, 0.00028619796
        %v828 = vmul.f32 %v825, %v827
        %v829 = vadd.f32 %v828, 0.0036580483
        %v830 = vmul.f32 %v825, %v829
        %v831 = vadd.f32 %v830, 0.05243302
        %v832 = vmul.f32 %v825, %v831
        %v833 = vadd.f32 %v832, 0.18741608
        %v834 = vmul.f32 %v825, %v833
        %v835 = vadd.f32 %v834, 1.1283791
        %v836 = vmul.f32 %v535, %v835
        %v837 = vmul.f32 %v825, 3.8918573e-05
        %v838 = vadd.f32 %v837, 0.001143296
        %v839 = vmul.f32 %v825, %v838
        %v840 = vadd.f32 %v839, 0.014752088
        %v841 = vmul.f32 %v825, %v840
        %v842 = vadd.f32 %v841, 0.112945676
        %v843 = vmul.f32 %v825, %v842
        %v844 = vadd.f32 %v843, 0.4994258
        %v845 = vmul.f32 %v825, %v844
        %v846 = vadd.f32 %v845, 1.0
        %v847 = vrcp.pop %v846
        %v848 = vmul.f32 %v846, %v847
        %v849 = vsub.f32 1.0, %v848
        %v850 = vmul.f32 %v847, %v849
        %v851 = vadd.f32 %v847, %v850
        %vm852 = vweird.f32 %v846
        %vm853 = vweird.f32 %v847
        %vm854 = vmor %vm852, %vm853
        %v855 = vsel %vm854, %v847, %v851
        %v856 = vand.u32 2147483647, %v846
        %vm857 = vcmp.eq.f32.partialorder %v856, 8.507059e+37
        %v858 = vand.u32 %v846, 2147483648
        %v859 = vor.u32 1.1754944e-38, %v858
        %v860 = vsel %vm857, %v859, %v855
        %v861 = vmul.f32 %v836, %v860
        %v862 = vmin.f32 %v861, 1.0
        %v863 = vmax.f32 %v862, -1.0
        %v864 = vmul.f32 %v536, %v536
        %v865 = vmin.f32 16.0, %v864
        %v866 = vmul.f32 %v865, 2.1237322e-06
        %v867 = vadd.f32 %v866, 0.00028619796
        %v868 = vmul.f32 %v865, %v867
        %v869 = vadd.f32 %v868, 0.0036580483
        %v870 = vmul.f32 %v865, %v869
        %v871 = vadd.f32 %v870, 0.05243302
        %v872 = vmul.f32 %v865, %v871
        %v873 = vadd.f32 %v872, 0.18741608
        %v874 = vmul.f32 %v865, %v873
        %v875 = vadd.f32 %v874, 1.1283791
        %v876 = vmul.f32 %v536, %v875
        %v877 = vmul.f32 %v865, 3.8918573e-05
        %v878 = vadd.f32 %v877, 0.001143296
        %v879 = vmul.f32 %v865, %v878
        %v880 = vadd.f32 %v879, 0.014752088
        %v881 = vmul.f32 %v865, %v880
        %v882 = vadd.f32 %v881, 0.112945676
        %v883 = vmul.f32 %v865, %v882
        %v884 = vadd.f32 %v883, 0.4994258
        %v885 = vmul.f32 %v865, %v884
        %v886 = vadd.f32 %v885, 1.0
        %v887 = vrcp.pop %v886
        %v888 = vmul.f32 %v886, %v887
        %v889 = vsub.f32 1.0, %v888
        %v890 = vmul.f32 %v887, %v889
        %v891 = vadd.f32 %v887, %v890
        %vm892 = vweird.f32 %v886
        %vm893 = vweird.f32 %v887
        %vm894 = vmor %vm892, %vm893
        %v895 = vsel %vm894, %v887, %v891
        %v896 = vand.u32 2147483647, %v886
        %vm897 = vcmp.eq.f32.partialorder %v896, 8.507059e+37
        %v898 = vand.u32 %v886, 2147483648
        %v899 = vor.u32 1.1754944e-38, %v898
        %v900 = vsel %vm897, %v899, %v895
        %v901 = vmul.f32 %v876, %v900
        %v902 = vmin.f32 %v901, 1.0
        %v903 = vmax.f32 %v902, -1.0
        %v904 = vmul.f32 %v537, %v537
        %v905 = vmin.f32 16.0, %v904
        %v906 = vmul.f32 %v905, 2.1237322e-06
        %v907 = vadd.f32 %v906, 0.00028619796
        %v908 = vmul.f32 %v905, %v907
        %v909 = vadd.f32 %v908, 0.0036580483
        %v910 = vmul.f32 %v905, %v909
        %v911 = vadd.f32 %v910, 0.05243302
        %v912 = vmul.f32 %v905, %v911
        %v913 = vadd.f32 %v912, 0.18741608
        %v914 = vmul.f32 %v905, %v913
        %v915 = vadd.f32 %v914, 1.1283791
        %v916 = vmul.f32 %v537, %v915
        %v917 = vmul.f32 %v905, 3.8918573e-05
        %v918 = vadd.f32 %v917, 0.001143296
        %v919 = vmul.f32 %v905, %v918
        %v920 = vadd.f32 %v919, 0.014752088
        %v921 = vmul.f32 %v905, %v920
        %v922 = vadd.f32 %v921, 0.112945676
        %v923 = vmul.f32 %v905, %v922
        %v924 = vadd.f32 %v923, 0.4994258
        %v925 = vmul.f32 %v905, %v924
        %v926 = vadd.f32 %v925, 1.0
        %v927 = vrcp.pop %v926
        %v928 = vmul.f32 %v926, %v927
        %v929 = vsub.f32 1.0, %v928
        %v930 = vmul.f32 %v927, %v929
        %v931 = vadd.f32 %v927, %v930
        %vm932 = vweird.f32 %v926
        %vm933 = vweird.f32 %v927
        %vm934 = vmor %vm932, %vm933
        %v935 = vsel %vm934, %v927, %v931
        %v936 = vand.u32 2147483647, %v926
        %vm937 = vcmp.eq.f32.partialorder %v936, 8.507059e+37
        %v938 = vand.u32 %v926, 2147483648
        %v939 = vor.u32 1.1754944e-38, %v938
        %v940 = vsel %vm937, %v939, %v935
        %v941 = vmul.f32 %v916, %v940
        %v942 = vmin.f32 %v941, 1.0
        %v943 = vmax.f32 %v942, -1.0
        %v944 = vmul.f32 %v538, %v538
        %v945 = vmin.f32 16.0, %v944
        %v946 = vmul.f32 %v945, 2.1237322e-06
        %v947 = vadd.f32 %v946, 0.00028619796
        %v948 = vmul.f32 %v945, %v947
        %v949 = vadd.f32 %v948, 0.0036580483
        %v950 = vmul.f32 %v945, %v949
        %v951 = vadd.f32 %v950, 0.05243302
        %v952 = vmul.f32 %v945, %v951
        %v953 = vadd.f32 %v952, 0.18741608
        %v954 = vmul.f32 %v945, %v953
        %v955 = vadd.f32 %v954, 1.1283791
        %v956 = vmul.f32 %v538, %v955
        %v957 = vmul.f32 %v945, 3.8918573e-05
        %v958 = vadd.f32 %v957, 0.001143296
        %v959 = vmul.f32 %v945, %v958
        %v960 = vadd.f32 %v959, 0.014752088
        %v961 = vmul.f32 %v945, %v960
        %v962 = vadd.f32 %v961, 0.112945676
        %v963 = vmul.f32 %v945, %v962
        %v964 = vadd.f32 %v963, 0.4994258
        %v965 = vmul.f32 %v945, %v964
        %v966 = vadd.f32 %v965, 1.0
        %v967 = vrcp.pop %v966
        %v968 = vmul.f32 %v966, %v967
        %v969 = vsub.f32 1.0, %v968
        %v970 = vmul.f32 %v967, %v969
        %v971 = vadd.f32 %v967, %v970
        %vm972 = vweird.f32 %v966
        %vm973 = vweird.f32 %v967
        %vm974 = vmor %vm972, %vm973
        %v975 = vsel %vm974, %v967, %v971
        %v976 = vand.u32 2147483647, %v966
        %vm977 = vcmp.eq.f32.partialorder %v976, 8.507059e+37
        %v978 = vand.u32 %v966, 2147483648
        %v979 = vor.u32 1.1754944e-38, %v978
        %v980 = vsel %vm977, %v979, %v975
        %v981 = vmul.f32 %v956, %v980
        %v982 = vmin.f32 %v981, 1.0
        %v983 = vmax.f32 %v982, -1.0
        %v984 = vmul.f32 %v539, %v539
        %v985 = vmin.f32 16.0, %v984
        %v986 = vmul.f32 %v985, 2.1237322e-06
        %v987 = vadd.f32 %v986, 0.00028619796
        %v988 = vmul.f32 %v985, %v987
        %v989 = vadd.f32 %v988, 0.0036580483
        %v990 = vmul.f32 %v985, %v989
        %v991 = vadd.f32 %v990, 0.05243302
        %v992 = vmul.f32 %v985, %v991
        %v993 = vadd.f32 %v992, 0.18741608
        %v994 = vmul.f32 %v985, %v993
        %v995 = vadd.f32 %v994, 1.1283791
        %v996 = vmul.f32 %v539, %v995
        %v997 = vmul.f32 %v985, 3.8918573e-05
        %v998 = vadd.f32 %v997, 0.001143296
        %v999 = vmul.f32 %v985, %v998
        %v1000 = vadd.f32 %v999, 0.014752088
        %v1001 = vmul.f32 %v985, %v1000
        %v1002 = vadd.f32 %v1001, 0.112945676
        %v1003 = vmul.f32 %v985, %v1002
        %v1004 = vadd.f32 %v1003, 0.4994258
        %v1005 = vmul.f32 %v985, %v1004
        %v1006 = vadd.f32 %v1005, 1.0
        %v1007 = vrcp.pop %v1006
        %v1008 = vmul.f32 %v1006, %v1007
        %v1009 = vsub.f32 1.0, %v1008
        %v1010 = vmul.f32 %v1007, %v1009
        %v1011 = vadd.f32 %v1007, %v1010
        %vm1012 = vweird.f32 %v1006
        %vm1013 = vweird.f32 %v1007
        %vm1014 = vmor %vm1012, %vm1013
        %v1015 = vsel %vm1014, %v1007, %v1011
        %v1016 = vand.u32 2147483647, %v1006
        %vm1017 = vcmp.eq.f32.partialorder %v1016, 8.507059e+37
        %v1018 = vand.u32 %v1006, 2147483648
        %v1019 = vor.u32 1.1754944e-38, %v1018
        %v1020 = vsel %vm1017, %v1019, %v1015
        %v1021 = vmul.f32 %v996, %v1020
        %v1022 = vmin.f32 %v1021, 1.0
        %v1023 = vmax.f32 %v1022, -1.0
        %v1024 = vmul.f32 %v540, %v540
        %v1025 = vmin.f32 16.0, %v1024
        %v1026 = vmul.f32 %v1025, 2.1237322e-06
        %v1027 = vadd.f32 %v1026, 0.00028619796
        %v1028 = vmul.f32 %v1025, %v1027
        %v1029 = vadd.f32 %v1028, 0.0036580483
        %v1030 = vmul.f32 %v1025, %v1029
        %v1031 = vadd.f32 %v1030, 0.05243302
        %v1032 = vmul.f32 %v1025, %v1031
        %v1033 = vadd.f32 %v1032, 0.18741608
        %v1034 = vmul.f32 %v1025, %v1033
        %v1035 = vadd.f32 %v1034, 1.1283791
        %v1036 = vmul.f32 %v540, %v1035
        %v1037 = vmul.f32 %v1025, 3.8918573e-05
        %v1038 = vadd.f32 %v1037, 0.001143296
        %v1039 = vmul.f32 %v1025, %v1038
        %v1040 = vadd.f32 %v1039, 0.014752088
        %v1041 = vmul.f32 %v1025, %v1040
        %v1042 = vadd.f32 %v1041, 0.112945676
        %v1043 = vmul.f32 %v1025, %v1042
        %v1044 = vadd.f32 %v1043, 0.4994258
        %v1045 = vmul.f32 %v1025, %v1044
        %v1046 = vadd.f32 %v1045, 1.0
        %v1047 = vrcp.pop %v1046
        %v1048 = vmul.f32 %v1046, %v1047
        %v1049 = vsub.f32 1.0, %v1048
        %v1050 = vmul.f32 %v1047, %v1049
        %v1051 = vadd.f32 %v1047, %v1050
        %vm1052 = vweird.f32 %v1046
        %vm1053 = vweird.f32 %v1047
        %vm1054 = vmor %vm1052, %vm1053
        %v1055 = vsel %vm1054, %v1047, %v1051
        %v1056 = vand.u32 2147483647, %v1046
        %vm1057 = vcmp.eq.f32.partialorder %v1056, 8.507059e+37
        %v1058 = vand.u32 %v1046, 2147483648
        %v1059 = vor.u32 1.1754944e-38, %v1058
        %v1060 = vsel %vm1057, %v1059, %v1055
        %v1061 = vmul.f32 %v1036, %v1060
        %v1062 = vmin.f32 %v1061, 1.0
        %v1063 = vmax.f32 %v1062, -1.0
        %v1064 = vmul.f32 %v541, %v541
        %v1065 = vmin.f32 16.0, %v1064
        %v1066 = vmul.f32 %v1065, 2.1237322e-06
        %v1067 = vadd.f32 %v1066, 0.00028619796
        %v1068 = vmul.f32 %v1065, %v1067
        %v1069 = vadd.f32 %v1068, 0.0036580483
        %v1070 = vmul.f32 %v1065, %v1069
        %v1071 = vadd.f32 %v1070, 0.05243302
        %v1072 = vmul.f32 %v1065, %v1071
        %v1073 = vadd.f32 %v1072, 0.18741608
        %v1074 = vmul.f32 %v1065, %v1073
        %v1075 = vadd.f32 %v1074, 1.1283791
        %v1076 = vmul.f32 %v541, %v1075
        %v1077 = vmul.f32 %v1065, 3.8918573e-05
        %v1078 = vadd.f32 %v1077, 0.001143296
        %v1079 = vmul.f32 %v1065, %v1078
        %v1080 = vadd.f32 %v1079, 0.014752088
        %v1081 = vmul.f32 %v1065, %v1080
        %v1082 = vadd.f32 %v1081, 0.112945676
        %v1083 = vmul.f32 %v1065, %v1082
        %v1084 = vadd.f32 %v1083, 0.4994258
        %v1085 = vmul.f32 %v1065, %v1084
        %v1086 = vadd.f32 %v1085, 1.0
        %v1087 = vrcp.pop %v1086
        %v1088 = vmul.f32 %v1086, %v1087
        %v1089 = vsub.f32 1.0, %v1088
        %v1090 = vmul.f32 %v1087, %v1089
        %v1091 = vadd.f32 %v1087, %v1090
        %vm1092 = vweird.f32 %v1086
        %vm1093 = vweird.f32 %v1087
        %vm1094 = vmor %vm1092, %vm1093
        %v1095 = vsel %vm1094, %v1087, %v1091
        %v1096 = vand.u32 2147483647, %v1086
        %vm1097 = vcmp.eq.f32.partialorder %v1096, 8.507059e+37
        %v1098 = vand.u32 %v1086, 2147483648
        %v1099 = vor.u32 1.1754944e-38, %v1098
        %v1100 = vsel %vm1097, %v1099, %v1095
        %v1101 = vmul.f32 %v1076, %v1100
        %v1102 = vmin.f32 %v1101, 1.0
        %v1103 = vmax.f32 %v1102, -1.0
        %v1104 = vmul.f32 %v542, %v542
        %v1105 = vmin.f32 16.0, %v1104
        %v1106 = vmul.f32 %v1105, 2.1237322e-06
        %v1107 = vadd.f32 %v1106, 0.00028619796
        %v1108 = vmul.f32 %v1105, %v1107
        %v1109 = vadd.f32 %v1108, 0.0036580483
        %v1110 = vmul.f32 %v1105, %v1109
        %v1111 = vadd.f32 %v1110, 0.05243302
        %v1112 = vmul.f32 %v1105, %v1111
        %v1113 = vadd.f32 %v1112, 0.18741608
        %v1114 = vmul.f32 %v1105, %v1113
        %v1115 = vadd.f32 %v1114, 1.1283791
        %v1116 = vmul.f32 %v542, %v1115
        %v1117 = vmul.f32 %v1105, 3.8918573e-05
        %v1118 = vadd.f32 %v1117, 0.001143296
        %v1119 = vmul.f32 %v1105, %v1118
        %v1120 = vadd.f32 %v1119, 0.014752088
        %v1121 = vmul.f32 %v1105, %v1120
        %v1122 = vadd.f32 %v1121, 0.112945676
        %v1123 = vmul.f32 %v1105, %v1122
        %v1124 = vadd.f32 %v1123, 0.4994258
        %v1125 = vmul.f32 %v1105, %v1124
        %v1126 = vadd.f32 %v1125, 1.0
        %v1127 = vrcp.pop %v1126
        %v1128 = vmul.f32 %v1126, %v1127
        %v1129 = vsub.f32 1.0, %v1128
        %v1130 = vmul.f32 %v1127, %v1129
        %v1131 = vadd.f32 %v1127, %v1130
        %vm1132 = vweird.f32 %v1126
        %vm1133 = vweird.f32 %v1127
        %vm1134 = vmor %vm1132, %vm1133
        %v1135 = vsel %vm1134, %v1127, %v1131
        %v1136 = vand.u32 2147483647, %v1126
        %vm1137 = vcmp.eq.f32.partialorder %v1136, 8.507059e+37
        %v1138 = vand.u32 %v1126, 2147483648
        %v1139 = vor.u32 1.1754944e-38, %v1138
        %v1140 = vsel %vm1137, %v1139, %v1135
        %v1141 = vmul.f32 %v1116, %v1140
        %v1142 = vmin.f32 %v1141, 1.0
        %v1143 = vmax.f32 %v1142, -1.0
        %v1144 = vmul.f32 %v543, %v543
        %v1145 = vmin.f32 16.0, %v1144
        %v1146 = vmul.f32 %v1145, 2.1237322e-06
        %v1147 = vadd.f32 %v1146, 0.00028619796
        %v1148 = vmul.f32 %v1145, %v1147
        %v1149 = vadd.f32 %v1148, 0.0036580483
        %v1150 = vmul.f32 %v1145, %v1149
        %v1151 = vadd.f32 %v1150, 0.05243302
        %v1152 = vmul.f32 %v1145, %v1151
        %v1153 = vadd.f32 %v1152, 0.18741608
        %v1154 = vmul.f32 %v1145, %v1153
        %v1155 = vadd.f32 %v1154, 1.1283791
        %v1156 = vmul.f32 %v543, %v1155
        %v1157 = vmul.f32 %v1145, 3.8918573e-05
        %v1158 = vadd.f32 %v1157, 0.001143296
        %v1159 = vmul.f32 %v1145, %v1158
        %v1160 = vadd.f32 %v1159, 0.014752088
        %v1161 = vmul.f32 %v1145, %v1160
        %v1162 = vadd.f32 %v1161, 0.112945676
        %v1163 = vmul.f32 %v1145, %v1162
        %v1164 = vadd.f32 %v1163, 0.4994258
        %v1165 = vmul.f32 %v1145, %v1164
        %v1166 = vadd.f32 %v1165, 1.0
        %v1167 = vrcp.pop %v1166
        %v1168 = vmul.f32 %v1166, %v1167
        %v1169 = vsub.f32 1.0, %v1168
        %v1170 = vmul.f32 %v1167, %v1169
        %v1171 = vadd.f32 %v1167, %v1170
        %vm1172 = vweird.f32 %v1166
        %vm1173 = vweird.f32 %v1167
        %vm1174 = vmor %vm1172, %vm1173
        %v1175 = vsel %vm1174, %v1167, %v1171
        %v1176 = vand.u32 2147483647, %v1166
        %vm1177 = vcmp.eq.f32.partialorder %v1176, 8.507059e+37
        %v1178 = vand.u32 %v1166, 2147483648
        %v1179 = vor.u32 1.1754944e-38, %v1178
        %v1180 = vsel %vm1177, %v1179, %v1175
        %v1181 = vmul.f32 %v1156, %v1180
        %v1182 = vmin.f32 %v1181, 1.0
        %v1183 = vmax.f32 %v1182, -1.0
        %v1184 = vadd.f32 %v583, 1.0
        %v1185 = vadd.f32 %v623, 1.0
        %v1186 = vadd.f32 %v663, 1.0
        %v1187 = vadd.f32 %v703, 1.0
        %v1188 = vadd.f32 %v743, 1.0
        %v1189 = vadd.f32 %v783, 1.0
        %v1190 = vadd.f32 %v823, 1.0
        %v1191 = vadd.f32 %v863, 1.0
        %v1192 = vadd.f32 %v903, 1.0
        %v1193 = vadd.f32 %v943, 1.0
        %v1194 = vadd.f32 %v983, 1.0
        %v1195 = vadd.f32 %v1023, 1.0
        %v1196 = vadd.f32 %v1063, 1.0
        %v1197 = vadd.f32 %v1103, 1.0
        %v1198 = vadd.f32 %v1143, 1.0
        %v1199 = vadd.f32 %v1183, 1.0
        %v1200 = vmul.f32 %v512, %v1184
        %v1201 = vmul.f32 %v513, %v1185
        %v1202 = vmul.f32 %v514, %v1186
        %v1203 = vmul.f32 %v515, %v1187
        %v1204 = vmul.f32 %v516, %v1188
        %v1205 = vmul.f32 %v517, %v1189
        %v1206 = vmul.f32 %v518, %v1190
        %v1207 = vmul.f32 %v519, %v1191
        %v1208 = vmul.f32 %v520, %v1192
        %v1209 = vmul.f32 %v521, %v1193
        %v1210 = vmul.f32 %v522, %v1194
        %v1211 = vmul.f32 %v523, %v1195
        %v1212 = vmul.f32 %v524, %v1196
        %v1213 = vmul.f32 %v525, %v1197
        %v1214 = vmul.f32 %v526, %v1198
        %v1215 = vmul.f32 %v527, %v1199
        %v1216 = vld [vmem:[#allocation2] sm:$0xff]
        %v1217 = vld [vmem:[#allocation2 + $0x8] sm:$0xff]
        %v1218 = vld [vmem:[#allocation2 + $0x10] sm:$0xff]
        %v1219 = vld [vmem:[#allocation2 + $0x18] sm:$0xff]
        %v1220 = vld [vmem:[#allocation2 + $0x20] sm:$0xff]
        %v1221 = vld [vmem:[#allocation2 + $0x28] sm:$0xff]
        %v1222 = vld [vmem:[#allocation2 + $0x30] sm:$0xff]
        %v1223 = vld [vmem:[#allocation2 + $0x38] sm:$0xff]
        %v1224 = vld [vmem:[#allocation2 + $0x40] sm:$0xff]
        %v1225 = vld [vmem:[#allocation2 + $0x48] sm:$0xff]
        %v1226 = vld [vmem:[#allocation2 + $0x50] sm:$0xff]
        %v1227 = vld [vmem:[#allocation2 + $0x58] sm:$0xff]
        %v1228 = vld [vmem:[#allocation2 + $0x60] sm:$0xff]
        %v1229 = vld [vmem:[#allocation2 + $0x68] sm:$0xff]
        %v1230 = vld [vmem:[#allocation2 + $0x70] sm:$0xff]
        %v1231 = vld [vmem:[#allocation2 + $0x78] sm:$0xff]
        %v1232 = vld [vmem:[%s383] sm:$0xff]
        %v1233 = vld [vmem:[%s383 + $0x8] sm:$0xff]
        %v1234 = vld [vmem:[%s383 + $0x10] sm:$0xff]
        %v1235 = vld [vmem:[%s383 + $0x18] sm:$0xff]
        %v1236 = vld [vmem:[%s383 + $0x20] sm:$0xff]
        %v1237 = vld [vmem:[%s383 + $0x28] sm:$0xff]
        %v1238 = vld [vmem:[%s383 + $0x30] sm:$0xff]
        %v1239 = vld [vmem:[%s383 + $0x38] sm:$0xff]
        %v1240 = vld [vmem:[%s383 + $0x40] sm:$0xff]
        %v1241 = vld [vmem:[%s383 + $0x48] sm:$0xff]
        %v1242 = vld [vmem:[%s383 + $0x50] sm:$0xff]
        %v1243 = vld [vmem:[%s383 + $0x58] sm:$0xff]
        %v1244 = vld [vmem:[%s383 + $0x60] sm:$0xff]
        %v1245 = vld [vmem:[%s383 + $0x68] sm:$0xff]
        %v1246 = vld [vmem:[%s383 + $0x70] sm:$0xff]
        %v1247 = vld [vmem:[%s383 + $0x78] sm:$0xff]
        %1248 = vmatpush.msra.mxu0 %v1247
        %1249 = vmatpush.msra.mxu0 %v1246
        %1250 = vmatpush.msra.mxu0 %v1245
        %1251 = vmatpush.msra.mxu0 %v1244
        %1252 = vmatpush.msra.mxu0 %v1243
        %1253 = vmatpush.msra.mxu0 %v1242
        %1254 = vmatpush.msra.mxu0 %v1241
        %1255 = vmatpush.msra.mxu0 %v1240
        %1256 = vmatpush.msra.mxu0 %v1239
        %1257 = vmatpush.msra.mxu0 %v1238
        %1258 = vmatpush.msra.mxu0 %v1237
        %1259 = vmatpush.msra.mxu0 %v1236
        %1260 = vmatpush.msra.mxu0 %v1235
        %1261 = vmatpush.msra.mxu0 %v1234
        %1262 = vmatpush.msra.mxu0 %v1233
        %1263 = vmatpush.msra.mxu0 %v1232
        %1264 = vmatmul.f32.gmra.mxu0 %v1200
        %v1265 = vpop.f32.mrf.mxu0
        %v1266 = vadd.f32 0.0, %v1265
        %1267 = vmatmul.f32.gmra.mxu0 %v1201
        %v1268 = vpop.f32.mrf.mxu0
        %v1269 = vadd.f32 0.0, %v1268
        %1270 = vmatmul.f32.gmra.mxu0 %v1202
        %v1271 = vpop.f32.mrf.mxu0
        %v1272 = vadd.f32 0.0, %v1271
        %1273 = vmatmul.f32.gmra.mxu0 %v1203
        %v1274 = vpop.f32.mrf.mxu0
        %v1275 = vadd.f32 0.0, %v1274
        %1276 = vmatmul.f32.gmra.mxu0 %v1204
        %v1277 = vpop.f32.mrf.mxu0
        %v1278 = vadd.f32 0.0, %v1277
        %1279 = vmatmul.f32.gmra.mxu0 %v1205
        %v1280 = vpop.f32.mrf.mxu0
        %v1281 = vadd.f32 0.0, %v1280
        %1282 = vmatmul.f32.gmra.mxu0 %v1206
        %v1283 = vpop.f32.mrf.mxu0
        %v1284 = vadd.f32 0.0, %v1283
        %1285 = vmatmul.f32.gmra.mxu0 %v1207
        %v1286 = vpop.f32.mrf.mxu0
        %v1287 = vadd.f32 0.0, %v1286
        %1288 = vmatmul.f32.gmra.mxu0 %v1208
        %v1289 = vpop.f32.mrf.mxu0
        %v1290 = vadd.f32 0.0, %v1289
        %1291 = vmatmul.f32.gmra.mxu0 %v1209
        %v1292 = vpop.f32.mrf.mxu0
        %v1293 = vadd.f32 0.0, %v1292
        %1294 = vmatmul.f32.gmra.mxu0 %v1210
        %v1295 = vpop.f32.mrf.mxu0
        %v1296 = vadd.f32 0.0, %v1295
        %1297 = vmatmul.f32.gmra.mxu0 %v1211
        %v1298 = vpop.f32.mrf.mxu0
        %v1299 = vadd.f32 0.0, %v1298
        %1300 = vmatmul.f32.gmra.mxu0 %v1212
        %v1301 = vpop.f32.mrf.mxu0
        %v1302 = vadd.f32 0.0, %v1301
        %1303 = vmatmul.f32.gmra.mxu0 %v1213
        %v1304 = vpop.f32.mrf.mxu0
        %v1305 = vadd.f32 0.0, %v1304
        %1306 = vmatmul.f32.gmra.mxu0 %v1214
        %v1307 = vpop.f32.mrf.mxu0
        %v1308 = vadd.f32 0.0, %v1307
        %1309 = vmatmul.f32.gmra.mxu0 %v1215
        %v1310 = vpop.f32.mrf.mxu0
        %v1311 = vadd.f32 0.0, %v1310
        %1312 = vdwg.mxu0
        %v1313 = vadd.f32 %v1216, %v1266
        %v1314 = vadd.f32 %v1217, %v1269
        %v1315 = vadd.f32 %v1218, %v1272
        %v1316 = vadd.f32 %v1219, %v1275
        %v1317 = vadd.f32 %v1220, %v1278
        %v1318 = vadd.f32 %v1221, %v1281
        %v1319 = vadd.f32 %v1222, %v1284
        %v1320 = vadd.f32 %v1223, %v1287
        %v1321 = vadd.f32 %v1224, %v1290
        %v1322 = vadd.f32 %v1225, %v1293
        %v1323 = vadd.f32 %v1226, %v1296
        %v1324 = vadd.f32 %v1227, %v1299
        %v1325 = vadd.f32 %v1228, %v1302
        %v1326 = vadd.f32 %v1229, %v1305
        %v1327 = vadd.f32 %v1230, %v1308
        %v1328 = vadd.f32 %v1231, %v1311
        %1329 = vst [vmem:[#allocation2] sm:$0xff] %v1313
        %1330 = vst [vmem:[#allocation2 + $0x8] sm:$0xff] %v1314
        %1331 = vst [vmem:[#allocation2 + $0x10] sm:$0xff] %v1315
        %1332 = vst [vmem:[#allocation2 + $0x18] sm:$0xff] %v1316
        %1333 = vst [vmem:[#allocation2 + $0x20] sm:$0xff] %v1317
        %1334 = vst [vmem:[#allocation2 + $0x28] sm:$0xff] %v1318
        %1335 = vst [vmem:[#allocation2 + $0x30] sm:$0xff] %v1319
        %1336 = vst [vmem:[#allocation2 + $0x38] sm:$0xff] %v1320
        %1337 = vst [vmem:[#allocation2 + $0x40] sm:$0xff] %v1321
        %1338 = vst [vmem:[#allocation2 + $0x48] sm:$0xff] %v1322
        %1339 = vst [vmem:[#allocation2 + $0x50] sm:$0xff] %v1323
        %1340 = vst [vmem:[#allocation2 + $0x58] sm:$0xff] %v1324
        %1341 = vst [vmem:[#allocation2 + $0x60] sm:$0xff] %v1325
        %1342 = vst [vmem:[#allocation2 + $0x68] sm:$0xff] %v1326
        %1343 = vst [vmem:[#allocation2 + $0x70] sm:$0xff] %v1327
        %1344 = vst [vmem:[#allocation2 + $0x78] sm:$0xff] %v1328
        %p1345 = scmp.eq.s32.totalorder %s21, 1
        // Predicated region
        $region83: #{mlp_forward.1} parent=73 // pred_check
          %p1346 = pneg %p1345
        $region84: #{mlp_forward.1} parent=73 // pred_check_branch
          %1348 = sbr.rel (%p1346) target = $region86
        $region85: #{mlp_forward.1} parent=73 // pred_region
          %v1349 = vld [vmem:[#allocation2] sm:$0xff]
          %v1350 = vld [vmem:[#allocation2 + $0x8] sm:$0xff]
          %v1351 = vld [vmem:[#allocation2 + $0x10] sm:$0xff]
          %v1352 = vld [vmem:[#allocation2 + $0x18] sm:$0xff]
          %v1353 = vld [vmem:[#allocation2 + $0x20] sm:$0xff]
          %v1354 = vld [vmem:[#allocation2 + $0x28] sm:$0xff]
          %v1355 = vld [vmem:[#allocation2 + $0x30] sm:$0xff]
          %v1356 = vld [vmem:[#allocation2 + $0x38] sm:$0xff]
          %v1357 = vld [vmem:[#allocation2 + $0x40] sm:$0xff]
          %v1358 = vld [vmem:[#allocation2 + $0x48] sm:$0xff]
          %v1359 = vld [vmem:[#allocation2 + $0x50] sm:$0xff]
          %v1360 = vld [vmem:[#allocation2 + $0x58] sm:$0xff]
          %v1361 = vld [vmem:[#allocation2 + $0x60] sm:$0xff]
          %v1362 = vld [vmem:[#allocation2 + $0x68] sm:$0xff]
          %v1363 = vld [vmem:[#allocation2 + $0x70] sm:$0xff]
          %v1364 = vld [vmem:[#allocation2 + $0x78] sm:$0xff]
          %v1365 = vld [vmem:[%s4] sm:$0x1]
          %v1367 = vperm.slane %v1365, 0
          %v1369 = vadd.f32 %v1349, %v1367
          %v1370 = vadd.f32 %v1350, %v1367
          %v1371 = vadd.f32 %v1351, %v1367
          %v1372 = vadd.f32 %v1352, %v1367
          %v1373 = vadd.f32 %v1353, %v1367
          %v1374 = vadd.f32 %v1354, %v1367
          %v1375 = vadd.f32 %v1355, %v1367
          %v1376 = vadd.f32 %v1356, %v1367
          %v1377 = vadd.f32 %v1357, %v1367
          %v1378 = vadd.f32 %v1358, %v1367
          %v1379 = vadd.f32 %v1359, %v1367
          %v1380 = vadd.f32 %v1360, %v1367
          %v1381 = vadd.f32 %v1361, %v1367
          %v1382 = vadd.f32 %v1362, %v1367
          %v1383 = vadd.f32 %v1363, %v1367
          %v1384 = vadd.f32 %v1364, %v1367
          %1385 = vst [vmem:[%s389] sm:$0xff] %v1369
          %1386 = vst [vmem:[%s389 + $0x8] sm:$0xff] %v1370
          %1387 = vst [vmem:[%s389 + $0x10] sm:$0xff] %v1371
          %1388 = vst [vmem:[%s389 + $0x18] sm:$0xff] %v1372
          %1389 = vst [vmem:[%s389 + $0x20] sm:$0xff] %v1373
          %1390 = vst [vmem:[%s389 + $0x28] sm:$0xff] %v1374
          %1391 = vst [vmem:[%s389 + $0x30] sm:$0xff] %v1375
          %1392 = vst [vmem:[%s389 + $0x38] sm:$0xff] %v1376
          %1393 = vst [vmem:[%s389 + $0x40] sm:$0xff] %v1377
          %1394 = vst [vmem:[%s389 + $0x48] sm:$0xff] %v1378
          %1395 = vst [vmem:[%s389 + $0x50] sm:$0xff] %v1379
          %1396 = vst [vmem:[%s389 + $0x58] sm:$0xff] %v1380
          %1397 = vst [vmem:[%s389 + $0x60] sm:$0xff] %v1381
          %1398 = vst [vmem:[%s389 + $0x68] sm:$0xff] %v1382
          %1399 = vst [vmem:[%s389 + $0x70] sm:$0xff] %v1383
          %1400 = vst [vmem:[%s389 + $0x78] sm:$0xff] %v1384
        $region86: #{mlp_forward.1} parent=73 // pred_fallthru
          _
        %s1401 = smul.u32 16, %s20
        %p1402 = scmp.lt.s32.totalorder %s1401, 15
        %s1403 = scalar_select %p1402, %s1401, 15
        %s1404 = smul.addr %s1403, 8
        %s1405 = scalar_lea.vmem %s5, %s1404
        // Predicated region
        $region87: #{mlp_forward.1} parent=73 // pred_check
          %p1406 = pneg %p171
        $region88: #{mlp_forward.1} parent=73 // pred_check_branch
          %1408 = sbr.rel (%p1406) target = $region90
        $region89: #{mlp_forward.1} parent=73 // pred_region
          %s1409 = smul.u32 16, %s20
        $region90: #{mlp_forward.1} parent=73 // pred_fallthru
          _
        // Predicated region
        $region91: #{mlp_forward.1} parent=73 // pred_check
          %p1410 = pneg %p171
        $region92: #{mlp_forward.1} parent=73 // pred_check_branch
          %1412 = sbr.rel (%p1410) target = $region94
        $region93: #{mlp_forward.1} parent=73 // pred_region
          %s1413 = smul.u32 16, %s20
          %p1414 = scmp.lt.s32.totalorder %s1413, 15
          %s1415 = scalar_select %p1414, %s1413, 15
          %s1416 = smul.addr %s1415, 8
          %s1417 = scalar_lea.vmem %s5, %s1416
        $region94: #{mlp_forward.1} parent=73 // pred_fallthru
          _
      $region74: #{mlp_forward.1} parent=5 // pred_fallthru
        _
      %p1418 = scmp.le.s32.totalorder 2, %s11
      // Predicated region
      $region95: #{mlp_forward.1} parent=5 // pred_check
        %p1419 = pneg %p1418
      $region96: #{mlp_forward.1} parent=5 // pred_check_branch
        %1421 = sbr.rel (%p1419) target = $region98
      $region97: #{mlp_forward.1} parent=5 // pred_region
        %s1422 = ssub.s32 %s11, 2
      $region98: #{mlp_forward.1} parent=5 // pred_fallthru
        _
    $region6: #{mlp_forward.1} parent=1 // loop_footer
      %s15 = sadd.s32 1, %s11
    $region7: #{mlp_forward.1} parent=1 // loop_footer_branch
      %10 = sbr.rel target = $region3
    $region8: #{mlp_forward.1} parent=1 // loop_exit
      _

</llo_original>
